<compile_context>
chip_gen: v7x
topology: tpu7x:2x2x1
jax: 0.10.0
libtpu: 0.0.40
codegen_flags: <defaults>
</compile_context>

<pallas_src>
import functools

import numpy as np
import jax
import jax.numpy as jnp
from jax import lax
from jax.experimental import pallas as pl
from jax.experimental.pallas import tpu as pltpu

KERNEL_SIZE = 11
HALF = KERNEL_SIZE // 2          # 5
SIGMA = 1.5
K1 = 0.01
K2 = 0.03
DATA_RANGE = 1.0
C1 = (K1 * DATA_RANGE) ** 2
C2 = (K2 * DATA_RANGE) ** 2

HALO = 16                        # extra rows fetched past each row tile (>= KERNEL_SIZE - 1)
MAX_TILE_ROWS = 128              # v5e advice: K of the banded matmul == one MXU pass
MAX_CHUNK_COLS = 1024            # in-kernel width chunk (bounds VMEM intermediates on v7x)
COL_HALO = 128                   # lane-aligned column halo per width chunk (>= KERNEL_SIZE - 1)


def _gaussian_1d(kernel_size: int, sigma: float) -> np.ndarray:
    # Matches torchmetrics _gaussian(): exp(-(i - ks//2)^2 / (2 sigma^2)), normalized.
    coords = np.arange(kernel_size, dtype=np.float64) - kernel_size // 2
    g = np.exp(-(coords ** 2) / (2.0 * sigma ** 2))
    return (g / g.sum()).astype(np.float32)


GAUSS = _gaussian_1d(KERNEL_SIZE, SIGMA)


def _band_main(tile_rows: int) -> np.ndarray:
    # B[r, r + k] = g[k] for taps that land inside the main tile rows.
    m = np.zeros((tile_rows, tile_rows), np.float32)
    for r in range(tile_rows):
        for k in range(KERNEL_SIZE):
            c = r + k
            if c < tile_rows:
                m[r, c] = GAUSS[k]
    return m


def _band_halo(tile_rows: int) -> np.ndarray:
    # B[r, h] = g[tile_rows + h - r] for taps that fall into the HALO-row block.
    m = np.zeros((tile_rows, HALO), np.float32)
    for r in range(tile_rows):
        for k in range(KERNEL_SIZE):
            c = r + k - tile_rows
            if 0 <= c < HALO:
                m[r, c] = GAUSS[k]
    return m


def _cdiv(a: int, b: int) -> int:
    return -(-a // b)


def _round_up(x: int, m: int) -> int:
    return (x + m - 1) // m * m


def _hconv_centered(v):
    """Centered 11-tap horizontal Gaussian: out[:, m] = sum_d g[5+d] * v[:, m+d].

    Symmetric shift-accumulate with pltpu.roll (XLU) + VPU FMAs; the circular
    wrap only contaminates columns outside the owned range [HALF, wc+HALF),
    which the precomputed column mask drops.
    """
    n = v.shape[1]
    acc = float(GAUSS[HALF]) * v
    for d in range(1, HALF + 1):
        acc = acc + float(GAUSS[HALF + d]) * (
            pltpu.roll(v, shift=d, axis=1) + pltpu.roll(v, shift=n - d, axis=1))
    return acc


def _ssim_tile_kernel(xm_ref, xh_ref, ym_ref, yh_ref, bm_ref, bh_ref, cmask_ref,
                      out_ref, *, tile_rows, wc, n_wc, h_valid):
    # Clamp to [0, 1] and center around 0.5 (f32).  Centering removes most of
    # the E[x^2] - mu^2 cancellation so the bf16 MXU pass stays well
    # conditioned; padded zeros become -0.5 (finite, masked out later).
    xm = jnp.clip(xm_ref[...], 0.0, 1.0) - 0.5
    ym = jnp.clip(ym_ref[...], 0.0, 1.0) - 0.5
    xh = jnp.clip(xh_ref[...], 0.0, 1.0) - 0.5
    yh = jnp.clip(yh_ref[...], 0.0, 1.0) - 0.5

    bm = bm_ref[...]                      # (TR, TR)  bf16, resident
    bh = bh_ref[...]                      # (TR, 16)  bf16, resident

    cw = wc + COL_HALO                    # chunk width incl. right column halo
    acc_cols = None                       # running sum of masked SSIM maps, (TR, cw)

    # In-kernel width chunking: chunk j owns centered output columns
    # [HALF, wc + HALF) of its slice; the 128-lane halo guarantees no circular
    # wrap reaches an owned column (COL_HALO >= KERNEL_SIZE - 1).
    for j in range(n_wc):
        sl = slice(j * wc, j * wc + cw)   # lane-aligned static slice
        xmc, ymc = xm[:, sl], ym[:, sl]
        xhc, yhc = xh[:, sl], yh[:, sl]

        # Per-moment processing (no wide concat slabs).
        conv = []
        for mm, mh in ((xmc, xhc), (ymc, yhc),
                       (xmc * xmc, xhc * xhc),
                       (ymc * ymc, yhc * yhc),
                       (xmc * ymc, xhc * yhc)):
            # Vertical Gaussian as a banded matmul: bf16 operands, f32 accumulate.
            v = (jnp.dot(bm, mm.astype(jnp.bfloat16),
                         preferred_element_type=jnp.float32)
                 + jnp.dot(bh, mh.astype(jnp.bfloat16),
                           preferred_element_type=jnp.float32))      # (TR, cw) f32
            conv.append(_hconv_centered(v))

        mu_xc, mu_yc, e_x2, e_y2, e_xy = conv
        mu_x = mu_xc + 0.5                # undo the centering (window weights sum to 1)
        mu_y = mu_yc + 0.5
        sig_x = e_x2 - mu_xc * mu_xc      # variances are shift-invariant
        sig_y = e_y2 - mu_yc * mu_yc
        sig_xy = e_xy - mu_xc * mu_yc

        num = (2.0 * mu_x * mu_y + C1) * (2.0 * sig_xy + C2)
        den = (mu_x * mu_x + mu_y * mu_y + C1) * (sig_x + sig_y + C2)
        ssim = num * pl.reciprocal(den, approx=True)      # EUP slot, not VPU

        # Precomputed, grid-invariant column validity/ownership mask -> 1 multiply.
        cmask = cmask_ref[pl.ds(j, 1), :]                 # (1, cw)
        contrib = ssim * cmask
        acc_cols = contrib if acc_cols is None else acc_cols + contrib

    # Fold lanes down to one vreg width with lane-aligned slices (no XLU reduce).
    acc128 = acc_cols[:, 0:128]
    for k in range(1, cw // 128):
        acc128 = acc128 + acc_cols[:, k * 128:(k + 1) * 128]

    # Only the per-tile row-validity test remains in-kernel.
    row0 = pl.program_id(0) * tile_rows
    gr = row0 + lax.broadcasted_iota(jnp.int32, (tile_rows, 128), 0)
    acc128 = jnp.where(gr < h_valid, acc128, 0.0)

    # Fold sublanes to an (8, 128) lane-dense partial (unmasked store).
    part = acc128[0:8, :]
    for k in range(1, tile_rows // 8):
        part = part + acc128[k * 8:(k + 1) * 8, :]
    out_ref[...] = part.reshape(1, 8, 128)


def _vmem_limit_bytes() -> int:
    cap = 64 * 1024 * 1024            # conservative default (v7x per-core VMEM)
    try:
        cap = int(getattr(pltpu.get_tpu_info(), "vmem_capacity_bytes", cap))
    except Exception:
        pass
    return max(32 * 1024 * 1024, min(int(0.75 * cap), 100 * 1024 * 1024))


def ssim_loss(prediction, target):
    """prediction/target: NCHW arrays.  Returns scalar 1 - SSIM of the [0, 0] slice."""
    img = prediction[0, 0].astype(jnp.float32)          # plain-JAX glue
    img_gt = target[0, 0].astype(jnp.float32)
    H, W = img.shape
    assert H >= KERNEL_SIZE and W >= KERNEL_SIZE, "image must be at least 11x11"
    Hv = H - (KERNEL_SIZE - 1)       # valid-conv output rows
    Wv = W - (KERNEL_SIZE - 1)       # valid-conv output cols

    # Width chunking parameters (chunk j reads input cols [j*wc, j*wc + wc + 128)).
    wc = min(MAX_CHUNK_COLS, _round_up(max(Wv, 1), 128))
    assert wc % 128 == 0 and COL_HALO >= KERNEL_SIZE - 1
    n_wc = _cdiv(Wv, wc)
    w_in = n_wc * wc + COL_HALO      # padded input width covers the last chunk's halo
    assert w_in >= W

    vmem_limit = _vmem_limit_bytes()

    # Row tiling: keep tile_rows <= 128 (v5e: K == one MXU pass); shrink if the
    # double-buffered full-width inputs + chunk intermediates would not fit.
    tile_rows = min(MAX_TILE_ROWS, _round_up(Hv, HALO))

    def _vmem_estimate(tr):
        inputs = 2 * 2 * (tr + HALO) * w_in * 4                       # 2 imgs x 2 buffers
        interm = (4 * (tr + HALO) * w_in + 10 * tr * (wc + COL_HALO)) * 4
        return inputs + interm

    while tile_rows > HALO and _vmem_estimate(tile_rows) > int(0.6 * vmem_limit):
        tile_rows -= HALO

    n_tiles = _cdiv(Hv, tile_rows)
    thb = tile_rows // HALO
    h_pad = n_tiles * tile_rows + HALO                   # room for the last halo block

    def pad(a):
        return jnp.pad(a, ((0, h_pad - H), (0, w_in - W)))

    x = pad(img)
    y = pad(img_gt)

    # Tiny resident banded matrices for the vertical pass (bf16 -> one MXU pass).
    b_main = jnp.asarray(_band_main(tile_rows), dtype=jnp.bfloat16)   # (TR, TR)
    b_halo = jnp.asarray(_band_halo(tile_rows), dtype=jnp.bfloat16)   # (TR, 16)

    # Grid-invariant column validity/ownership mask, one row per width chunk:
    # mask[j, m] = 1 iff HALF <= m < wc + HALF (chunk ownership, no wrap) and
    #              j*wc + m < Wv + HALF       (inside the valid image region).
    m_idx = np.arange(wc + COL_HALO)
    cmask_np = ((m_idx[None, :] >= HALF) & (m_idx[None, :] < wc + HALF)
                & (np.arange(n_wc)[:, None] * wc + m_idx[None, :] < Wv + HALF))
    cmask = jnp.asarray(cmask_np.astype(np.float32))

    kernel = functools.partial(_ssim_tile_kernel, tile_rows=tile_rows, wc=wc,
                               n_wc=n_wc, h_valid=Hv)

    partials = pl.pallas_call(
        kernel,
        out_shape=jax.ShapeDtypeStruct((n_tiles, 8, 128), jnp.float32),
        grid=(n_tiles,),
        in_specs=[
            pl.BlockSpec((tile_rows, w_in), lambda i: (i, 0)),          # x: main rows
            pl.BlockSpec((HALO, w_in), lambda i: ((i + 1) * thb, 0)),   # x: halo rows
            pl.BlockSpec((tile_rows, w_in), lambda i: (i, 0)),          # y: main rows
            pl.BlockSpec((HALO, w_in), lambda i: ((i + 1) * thb, 0)),   # y: halo rows
            pl.BlockSpec((tile_rows, tile_rows), lambda i: (0, 0)),     # vertical band
            pl.BlockSpec((tile_rows, HALO), lambda i: (0, 0)),          # halo band
            pl.BlockSpec((n_wc, wc + COL_HALO), lambda i: (0, 0)),      # column mask
        ],
        out_specs=pl.BlockSpec((1, 8, 128), lambda i: (i, 0, 0)),
        compiler_params=pltpu.CompilerParams(
            dimension_semantics=("parallel",),
            vmem_limit_bytes=vmem_limit),
    )(x, x, y, y, b_main, b_halo, cmask)

    # Finalize (mean over valid region, 1 - ssim) in the tiny JAX wrapper.
    return 1.0 - jnp.sum(partials) / (Hv * Wv)


if __name__ == "__main__":
    key = jax.random.PRNGKey(0)
    k1, k2 = jax.random.split(key)
    # Small NCHW inputs; values outside [0, 1] exercise the clamp.
    prediction = jax.random.uniform(k1, (2, 4, 16, 16), jnp.float32,
                                    minval=-0.2, maxval=1.2)
    target = jax.random.uniform(k2, (2, 4, 16, 16), jnp.float32,
                                minval=-0.2, maxval=1.2)

    loss = jax.jit(ssim_loss)(prediction, target)
    jax.block_until_ready(loss)
    assert loss.shape == () and bool(jnp.isfinite(loss))
    print("KERNEL_OK")
</pallas_src>

<mosaic_0001>
module attributes {stable_mosaic.version = 11 : i64} {
  func.func @_ssim_tile_kernel(%arg0: i32, %arg1: memref<16x256xf32, #tpu.memory_space<vmem>>, %arg2: memref<16x256xf32, #tpu.memory_space<vmem>>, %arg3: memref<16x256xf32, #tpu.memory_space<vmem>>, %arg4: memref<16x256xf32, #tpu.memory_space<vmem>>, %arg5: memref<16x16xbf16, #tpu.memory_space<vmem>>, %arg6: memref<16x16xbf16, #tpu.memory_space<vmem>>, %arg7: memref<1x256xf32, #tpu.memory_space<vmem>>, %arg8: memref<1x8x128xf32, #tpu.memory_space<vmem>>) attributes {dimension_semantics = [#tpu.dimension_semantics<parallel>], iteration_bounds = array<i64: 1>, scalar_prefetch = 0 : i64, scratch_operands = 0 : i64, tpu.core_type = #tpu.core_type<tc>, window_params = [{transform_indices = @transform_0, window_bounds = array<i64: 16, 256>}, {transform_indices = @transform_1, window_bounds = array<i64: 16, 256>}, {transform_indices = @transform_2, window_bounds = array<i64: 16, 256>}, {transform_indices = @transform_3, window_bounds = array<i64: 16, 256>}, {pipeline_mode = #tpu.pipeline_mode<synchronous>, transform_indices = @transform_4, window_bounds = array<i64: 16, 16>}, {pipeline_mode = #tpu.pipeline_mode<synchronous>, transform_indices = @transform_5, window_bounds = array<i64: 16, 16>}, {pipeline_mode = #tpu.pipeline_mode<synchronous>, transform_indices = @transform_6, window_bounds = array<i64: 1, 256>}, {transform_indices = @transform_7, window_bounds = array<i64: 1, 8, 128>}]} {
    %c0 = arith.constant 0 : index
    %c0_0 = arith.constant 0 : index
    %0 = vector.load %arg1[%c0, %c0_0] : memref<16x256xf32, #tpu.memory_space<vmem>>, vector<16x256xf32>
    %cst = arith.constant 0.000000e+00 : f32
    %cst_1 = arith.constant 1.000000e+00 : f32
    %1 = vector.broadcast %cst : f32 to vector<16x256xf32>
    %2 = arith.maximumf %1, %0 : vector<16x256xf32>
    %3 = vector.broadcast %cst_1 : f32 to vector<16x256xf32>
    %4 = arith.minimumf %3, %2 : vector<16x256xf32>
    %cst_2 = arith.constant 5.000000e-01 : f32
    %5 = vector.broadcast %cst_2 : f32 to vector<16x256xf32>
    %6 = arith.subf %4, %5 : vector<16x256xf32>
    %c0_3 = arith.constant 0 : index
    %c0_4 = arith.constant 0 : index
    %7 = vector.load %arg3[%c0_3, %c0_4] : memref<16x256xf32, #tpu.memory_space<vmem>>, vector<16x256xf32>
    %cst_5 = arith.constant 0.000000e+00 : f32
    %cst_6 = arith.constant 1.000000e+00 : f32
    %8 = vector.broadcast %cst_5 : f32 to vector<16x256xf32>
    %9 = arith.maximumf %8, %7 : vector<16x256xf32>
    %10 = vector.broadcast %cst_6 : f32 to vector<16x256xf32>
    %11 = arith.minimumf %10, %9 : vector<16x256xf32>
    %cst_7 = arith.constant 5.000000e-01 : f32
    %12 = vector.broadcast %cst_7 : f32 to vector<16x256xf32>
    %13 = arith.subf %11, %12 : vector<16x256xf32>
    %c0_8 = arith.constant 0 : index
    %c0_9 = arith.constant 0 : index
    %14 = vector.load %arg2[%c0_8, %c0_9] : memref<16x256xf32, #tpu.memory_space<vmem>>, vector<16x256xf32>
    %cst_10 = arith.constant 0.000000e+00 : f32
    %cst_11 = arith.constant 1.000000e+00 : f32
    %15 = vector.broadcast %cst_10 : f32 to vector<16x256xf32>
    %16 = arith.maximumf %15, %14 : vector<16x256xf32>
    %17 = vector.broadcast %cst_11 : f32 to vector<16x256xf32>
    %18 = arith.minimumf %17, %16 : vector<16x256xf32>
    %cst_12 = arith.constant 5.000000e-01 : f32
    %19 = vector.broadcast %cst_12 : f32 to vector<16x256xf32>
    %20 = arith.subf %18, %19 : vector<16x256xf32>
    %c0_13 = arith.constant 0 : index
    %c0_14 = arith.constant 0 : index
    %21 = vector.load %arg4[%c0_13, %c0_14] : memref<16x256xf32, #tpu.memory_space<vmem>>, vector<16x256xf32>
    %cst_15 = arith.constant 0.000000e+00 : f32
    %cst_16 = arith.constant 1.000000e+00 : f32
    %22 = vector.broadcast %cst_15 : f32 to vector<16x256xf32>
    %23 = arith.maximumf %22, %21 : vector<16x256xf32>
    %24 = vector.broadcast %cst_16 : f32 to vector<16x256xf32>
    %25 = arith.minimumf %24, %23 : vector<16x256xf32>
    %cst_17 = arith.constant 5.000000e-01 : f32
    %26 = vector.broadcast %cst_17 : f32 to vector<16x256xf32>
    %27 = arith.subf %25, %26 : vector<16x256xf32>
    %c0_18 = arith.constant 0 : index
    %c0_19 = arith.constant 0 : index
    %28 = vector.load %arg5[%c0_18, %c0_19] : memref<16x16xbf16, #tpu.memory_space<vmem>>, vector<16x16xbf16>
    %c0_20 = arith.constant 0 : index
    %c0_21 = arith.constant 0 : index
    %29 = vector.load %arg6[%c0_20, %c0_21] : memref<16x16xbf16, #tpu.memory_space<vmem>>, vector<16x16xbf16>
    %30 = arith.mulf %6, %6 : vector<16x256xf32>
    %31 = arith.mulf %20, %20 : vector<16x256xf32>
    %32 = arith.mulf %13, %13 : vector<16x256xf32>
    %33 = arith.mulf %27, %27 : vector<16x256xf32>
    %34 = arith.mulf %6, %13 : vector<16x256xf32>
    %35 = arith.mulf %20, %27 : vector<16x256xf32>
    %36 = arith.truncf %6 : vector<16x256xf32> to vector<16x256xbf16>
    %cst_22 = arith.constant dense<0.000000e+00> : vector<16x256xf32>
    %37 = tpu.matmul %28, %36, %cst_22 {dimension_numbers = #tpu.dot_dimension_numbers<[1], [0], [0], [1], [0, 0, 1, 1], [], []>} : vector<16x16xbf16>, vector<16x256xbf16>, vector<16x256xf32> -> vector<16x256xf32>
    %38 = arith.truncf %20 : vector<16x256xf32> to vector<16x256xbf16>
    %cst_23 = arith.constant dense<0.000000e+00> : vector<16x256xf32>
    %39 = tpu.matmul %29, %38, %cst_23 {dimension_numbers = #tpu.dot_dimension_numbers<[1], [0], [0], [1], [0, 0, 1, 1], [], []>} : vector<16x16xbf16>, vector<16x256xbf16>, vector<16x256xf32> -> vector<16x256xf32>
    %40 = arith.addf %37, %39 : vector<16x256xf32>
    %cst_24 = arith.constant 0.266011715 : f32
    %41 = vector.broadcast %cst_24 : f32 to vector<16x256xf32>
    %42 = arith.mulf %41, %40 : vector<16x256xf32>
    %c1_i32 = arith.constant 1 : i32
    %43 = tpu.dynamic_rotate %40 by %c1_i32 dim 1 : vector<16x256xf32>, i32 -> vector<16x256xf32>
    %c255_i32 = arith.constant 255 : i32
    %44 = tpu.dynamic_rotate %40 by %c255_i32 dim 1 : vector<16x256xf32>, i32 -> vector<16x256xf32>
    %45 = arith.addf %43, %44 : vector<16x256xf32>
    %cst_25 = arith.constant 0.213005543 : f32
    %46 = vector.broadcast %cst_25 : f32 to vector<16x256xf32>
    %47 = arith.mulf %46, %45 : vector<16x256xf32>
    %48 = arith.addf %42, %47 : vector<16x256xf32>
    %c2_i32 = arith.constant 2 : i32
    %49 = tpu.dynamic_rotate %40 by %c2_i32 dim 1 : vector<16x256xf32>, i32 -> vector<16x256xf32>
    %c254_i32 = arith.constant 254 : i32
    %50 = tpu.dynamic_rotate %40 by %c254_i32 dim 1 : vector<16x256xf32>, i32 -> vector<16x256xf32>
    %51 = arith.addf %49, %50 : vector<16x256xf32>
    %cst_26 = arith.constant 0.109360687 : f32
    %52 = vector.broadcast %cst_26 : f32 to vector<16x256xf32>
    %53 = arith.mulf %52, %51 : vector<16x256xf32>
    %54 = arith.addf %48, %53 : vector<16x256xf32>
    %c3_i32 = arith.constant 3 : i32
    %55 = tpu.dynamic_rotate %40 by %c3_i32 dim 1 : vector<16x256xf32>, i32 -> vector<16x256xf32>
    %c253_i32 = arith.constant 253 : i32
    %56 = tpu.dynamic_rotate %40 by %c253_i32 dim 1 : vector<16x256xf32>, i32 -> vector<16x256xf32>
    %57 = arith.addf %55, %56 : vector<16x256xf32>
    %cst_27 = arith.constant 0.0360007733 : f32
    %58 = vector.broadcast %cst_27 : f32 to vector<16x256xf32>
    %59 = arith.mulf %58, %57 : vector<16x256xf32>
    %60 = arith.addf %54, %59 : vector<16x256xf32>
    %c4_i32 = arith.constant 4 : i32
    %61 = tpu.dynamic_rotate %40 by %c4_i32 dim 1 : vector<16x256xf32>, i32 -> vector<16x256xf32>
    %c252_i32 = arith.constant 252 : i32
    %62 = tpu.dynamic_rotate %40 by %c252_i32 dim 1 : vector<16x256xf32>, i32 -> vector<16x256xf32>
    %63 = arith.addf %61, %62 : vector<16x256xf32>
    %cst_28 = arith.constant 0.00759875821 : f32
    %64 = vector.broadcast %cst_28 : f32 to vector<16x256xf32>
    %65 = arith.mulf %64, %63 : vector<16x256xf32>
    %66 = arith.addf %60, %65 : vector<16x256xf32>
    %c5_i32 = arith.constant 5 : i32
    %67 = tpu.dynamic_rotate %40 by %c5_i32 dim 1 : vector<16x256xf32>, i32 -> vector<16x256xf32>
    %c251_i32 = arith.constant 251 : i32
    %68 = tpu.dynamic_rotate %40 by %c251_i32 dim 1 : vector<16x256xf32>, i32 -> vector<16x256xf32>
    %69 = arith.addf %67, %68 : vector<16x256xf32>
    %cst_29 = arith.constant 0.00102838012 : f32
    %70 = vector.broadcast %cst_29 : f32 to vector<16x256xf32>
    %71 = arith.mulf %70, %69 : vector<16x256xf32>
    %72 = arith.addf %66, %71 : vector<16x256xf32>
    %73 = arith.truncf %13 : vector<16x256xf32> to vector<16x256xbf16>
    %cst_30 = arith.constant dense<0.000000e+00> : vector<16x256xf32>
    %74 = tpu.matmul %28, %73, %cst_30 {dimension_numbers = #tpu.dot_dimension_numbers<[1], [0], [0], [1], [0, 0, 1, 1], [], []>} : vector<16x16xbf16>, vector<16x256xbf16>, vector<16x256xf32> -> vector<16x256xf32>
    %75 = arith.truncf %27 : vector<16x256xf32> to vector<16x256xbf16>
    %cst_31 = arith.constant dense<0.000000e+00> : vector<16x256xf32>
    %76 = tpu.matmul %29, %75, %cst_31 {dimension_numbers = #tpu.dot_dimension_numbers<[1], [0], [0], [1], [0, 0, 1, 1], [], []>} : vector<16x16xbf16>, vector<16x256xbf16>, vector<16x256xf32> -> vector<16x256xf32>
    %77 = arith.addf %74, %76 : vector<16x256xf32>
    %cst_32 = arith.constant 0.266011715 : f32
    %78 = vector.broadcast %cst_32 : f32 to vector<16x256xf32>
    %79 = arith.mulf %78, %77 : vector<16x256xf32>
    %c1_i32_33 = arith.constant 1 : i32
    %80 = tpu.dynamic_rotate %77 by %c1_i32_33 dim 1 : vector<16x256xf32>, i32 -> vector<16x256xf32>
    %c255_i32_34 = arith.constant 255 : i32
    %81 = tpu.dynamic_rotate %77 by %c255_i32_34 dim 1 : vector<16x256xf32>, i32 -> vector<16x256xf32>
    %82 = arith.addf %80, %81 : vector<16x256xf32>
    %cst_35 = arith.constant 0.213005543 : f32
    %83 = vector.broadcast %cst_35 : f32 to vector<16x256xf32>
    %84 = arith.mulf %83, %82 : vector<16x256xf32>
    %85 = arith.addf %79, %84 : vector<16x256xf32>
    %c2_i32_36 = arith.constant 2 : i32
    %86 = tpu.dynamic_rotate %77 by %c2_i32_36 dim 1 : vector<16x256xf32>, i32 -> vector<16x256xf32>
    %c254_i32_37 = arith.constant 254 : i32
    %87 = tpu.dynamic_rotate %77 by %c254_i32_37 dim 1 : vector<16x256xf32>, i32 -> vector<16x256xf32>
    %88 = arith.addf %86, %87 : vector<16x256xf32>
    %cst_38 = arith.constant 0.109360687 : f32
    %89 = vector.broadcast %cst_38 : f32 to vector<16x256xf32>
    %90 = arith.mulf %89, %88 : vector<16x256xf32>
    %91 = arith.addf %85, %90 : vector<16x256xf32>
    %c3_i32_39 = arith.constant 3 : i32
    %92 = tpu.dynamic_rotate %77 by %c3_i32_39 dim 1 : vector<16x256xf32>, i32 -> vector<16x256xf32>
    %c253_i32_40 = arith.constant 253 : i32
    %93 = tpu.dynamic_rotate %77 by %c253_i32_40 dim 1 : vector<16x256xf32>, i32 -> vector<16x256xf32>
    %94 = arith.addf %92, %93 : vector<16x256xf32>
    %cst_41 = arith.constant 0.0360007733 : f32
    %95 = vector.broadcast %cst_41 : f32 to vector<16x256xf32>
    %96 = arith.mulf %95, %94 : vector<16x256xf32>
    %97 = arith.addf %91, %96 : vector<16x256xf32>
    %c4_i32_42 = arith.constant 4 : i32
    %98 = tpu.dynamic_rotate %77 by %c4_i32_42 dim 1 : vector<16x256xf32>, i32 -> vector<16x256xf32>
    %c252_i32_43 = arith.constant 252 : i32
    %99 = tpu.dynamic_rotate %77 by %c252_i32_43 dim 1 : vector<16x256xf32>, i32 -> vector<16x256xf32>
    %100 = arith.addf %98, %99 : vector<16x256xf32>
    %cst_44 = arith.constant 0.00759875821 : f32
    %101 = vector.broadcast %cst_44 : f32 to vector<16x256xf32>
    %102 = arith.mulf %101, %100 : vector<16x256xf32>
    %103 = arith.addf %97, %102 : vector<16x256xf32>
    %c5_i32_45 = arith.constant 5 : i32
    %104 = tpu.dynamic_rotate %77 by %c5_i32_45 dim 1 : vector<16x256xf32>, i32 -> vector<16x256xf32>
    %c251_i32_46 = arith.constant 251 : i32
    %105 = tpu.dynamic_rotate %77 by %c251_i32_46 dim 1 : vector<16x256xf32>, i32 -> vector<16x256xf32>
    %106 = arith.addf %104, %105 : vector<16x256xf32>
    %cst_47 = arith.constant 0.00102838012 : f32
    %107 = vector.broadcast %cst_47 : f32 to vector<16x256xf32>
    %108 = arith.mulf %107, %106 : vector<16x256xf32>
    %109 = arith.addf %103, %108 : vector<16x256xf32>
    %110 = arith.truncf %30 : vector<16x256xf32> to vector<16x256xbf16>
    %cst_48 = arith.constant dense<0.000000e+00> : vector<16x256xf32>
    %111 = tpu.matmul %28, %110, %cst_48 {dimension_numbers = #tpu.dot_dimension_numbers<[1], [0], [0], [1], [0, 0, 1, 1], [], []>} : vector<16x16xbf16>, vector<16x256xbf16>, vector<16x256xf32> -> vector<16x256xf32>
    %112 = arith.truncf %31 : vector<16x256xf32> to vector<16x256xbf16>
    %cst_49 = arith.constant dense<0.000000e+00> : vector<16x256xf32>
    %113 = tpu.matmul %29, %112, %cst_49 {dimension_numbers = #tpu.dot_dimension_numbers<[1], [0], [0], [1], [0, 0, 1, 1], [], []>} : vector<16x16xbf16>, vector<16x256xbf16>, vector<16x256xf32> -> vector<16x256xf32>
    %114 = arith.addf %111, %113 : vector<16x256xf32>
    %cst_50 = arith.constant 0.266011715 : f32
    %115 = vector.broadcast %cst_50 : f32 to vector<16x256xf32>
    %116 = arith.mulf %115, %114 : vector<16x256xf32>
    %c1_i32_51 = arith.constant 1 : i32
    %117 = tpu.dynamic_rotate %114 by %c1_i32_51 dim 1 : vector<16x256xf32>, i32 -> vector<16x256xf32>
    %c255_i32_52 = arith.constant 255 : i32
    %118 = tpu.dynamic_rotate %114 by %c255_i32_52 dim 1 : vector<16x256xf32>, i32 -> vector<16x256xf32>
    %119 = arith.addf %117, %118 : vector<16x256xf32>
    %cst_53 = arith.constant 0.213005543 : f32
    %120 = vector.broadcast %cst_53 : f32 to vector<16x256xf32>
    %121 = arith.mulf %120, %119 : vector<16x256xf32>
    %122 = arith.addf %116, %121 : vector<16x256xf32>
    %c2_i32_54 = arith.constant 2 : i32
    %123 = tpu.dynamic_rotate %114 by %c2_i32_54 dim 1 : vector<16x256xf32>, i32 -> vector<16x256xf32>
    %c254_i32_55 = arith.constant 254 : i32
    %124 = tpu.dynamic_rotate %114 by %c254_i32_55 dim 1 : vector<16x256xf32>, i32 -> vector<16x256xf32>
    %125 = arith.addf %123, %124 : vector<16x256xf32>
    %cst_56 = arith.constant 0.109360687 : f32
    %126 = vector.broadcast %cst_56 : f32 to vector<16x256xf32>
    %127 = arith.mulf %126, %125 : vector<16x256xf32>
    %128 = arith.addf %122, %127 : vector<16x256xf32>
    %c3_i32_57 = arith.constant 3 : i32
    %129 = tpu.dynamic_rotate %114 by %c3_i32_57 dim 1 : vector<16x256xf32>, i32 -> vector<16x256xf32>
    %c253_i32_58 = arith.constant 253 : i32
    %130 = tpu.dynamic_rotate %114 by %c253_i32_58 dim 1 : vector<16x256xf32>, i32 -> vector<16x256xf32>
    %131 = arith.addf %129, %130 : vector<16x256xf32>
    %cst_59 = arith.constant 0.0360007733 : f32
    %132 = vector.broadcast %cst_59 : f32 to vector<16x256xf32>
    %133 = arith.mulf %132, %131 : vector<16x256xf32>
    %134 = arith.addf %128, %133 : vector<16x256xf32>
    %c4_i32_60 = arith.constant 4 : i32
    %135 = tpu.dynamic_rotate %114 by %c4_i32_60 dim 1 : vector<16x256xf32>, i32 -> vector<16x256xf32>
    %c252_i32_61 = arith.constant 252 : i32
    %136 = tpu.dynamic_rotate %114 by %c252_i32_61 dim 1 : vector<16x256xf32>, i32 -> vector<16x256xf32>
    %137 = arith.addf %135, %136 : vector<16x256xf32>
    %cst_62 = arith.constant 0.00759875821 : f32
    %138 = vector.broadcast %cst_62 : f32 to vector<16x256xf32>
    %139 = arith.mulf %138, %137 : vector<16x256xf32>
    %140 = arith.addf %134, %139 : vector<16x256xf32>
    %c5_i32_63 = arith.constant 5 : i32
    %141 = tpu.dynamic_rotate %114 by %c5_i32_63 dim 1 : vector<16x256xf32>, i32 -> vector<16x256xf32>
    %c251_i32_64 = arith.constant 251 : i32
    %142 = tpu.dynamic_rotate %114 by %c251_i32_64 dim 1 : vector<16x256xf32>, i32 -> vector<16x256xf32>
    %143 = arith.addf %141, %142 : vector<16x256xf32>
    %cst_65 = arith.constant 0.00102838012 : f32
    %144 = vector.broadcast %cst_65 : f32 to vector<16x256xf32>
    %145 = arith.mulf %144, %143 : vector<16x256xf32>
    %146 = arith.addf %140, %145 : vector<16x256xf32>
    %147 = arith.truncf %32 : vector<16x256xf32> to vector<16x256xbf16>
    %cst_66 = arith.constant dense<0.000000e+00> : vector<16x256xf32>
    %148 = tpu.matmul %28, %147, %cst_66 {dimension_numbers = #tpu.dot_dimension_numbers<[1], [0], [0], [1], [0, 0, 1, 1], [], []>} : vector<16x16xbf16>, vector<16x256xbf16>, vector<16x256xf32> -> vector<16x256xf32>
    %149 = arith.truncf %33 : vector<16x256xf32> to vector<16x256xbf16>
    %cst_67 = arith.constant dense<0.000000e+00> : vector<16x256xf32>
    %150 = tpu.matmul %29, %149, %cst_67 {dimension_numbers = #tpu.dot_dimension_numbers<[1], [0], [0], [1], [0, 0, 1, 1], [], []>} : vector<16x16xbf16>, vector<16x256xbf16>, vector<16x256xf32> -> vector<16x256xf32>
    %151 = arith.addf %148, %150 : vector<16x256xf32>
    %cst_68 = arith.constant 0.266011715 : f32
    %152 = vector.broadcast %cst_68 : f32 to vector<16x256xf32>
    %153 = arith.mulf %152, %151 : vector<16x256xf32>
    %c1_i32_69 = arith.constant 1 : i32
    %154 = tpu.dynamic_rotate %151 by %c1_i32_69 dim 1 : vector<16x256xf32>, i32 -> vector<16x256xf32>
    %c255_i32_70 = arith.constant 255 : i32
    %155 = tpu.dynamic_rotate %151 by %c255_i32_70 dim 1 : vector<16x256xf32>, i32 -> vector<16x256xf32>
    %156 = arith.addf %154, %155 : vector<16x256xf32>
    %cst_71 = arith.constant 0.213005543 : f32
    %157 = vector.broadcast %cst_71 : f32 to vector<16x256xf32>
    %158 = arith.mulf %157, %156 : vector<16x256xf32>
    %159 = arith.addf %153, %158 : vector<16x256xf32>
    %c2_i32_72 = arith.constant 2 : i32
    %160 = tpu.dynamic_rotate %151 by %c2_i32_72 dim 1 : vector<16x256xf32>, i32 -> vector<16x256xf32>
    %c254_i32_73 = arith.constant 254 : i32
    %161 = tpu.dynamic_rotate %151 by %c254_i32_73 dim 1 : vector<16x256xf32>, i32 -> vector<16x256xf32>
    %162 = arith.addf %160, %161 : vector<16x256xf32>
    %cst_74 = arith.constant 0.109360687 : f32
    %163 = vector.broadcast %cst_74 : f32 to vector<16x256xf32>
    %164 = arith.mulf %163, %162 : vector<16x256xf32>
    %165 = arith.addf %159, %164 : vector<16x256xf32>
    %c3_i32_75 = arith.constant 3 : i32
    %166 = tpu.dynamic_rotate %151 by %c3_i32_75 dim 1 : vector<16x256xf32>, i32 -> vector<16x256xf32>
    %c253_i32_76 = arith.constant 253 : i32
    %167 = tpu.dynamic_rotate %151 by %c253_i32_76 dim 1 : vector<16x256xf32>, i32 -> vector<16x256xf32>
    %168 = arith.addf %166, %167 : vector<16x256xf32>
    %cst_77 = arith.constant 0.0360007733 : f32
    %169 = vector.broadcast %cst_77 : f32 to vector<16x256xf32>
    %170 = arith.mulf %169, %168 : vector<16x256xf32>
    %171 = arith.addf %165, %170 : vector<16x256xf32>
    %c4_i32_78 = arith.constant 4 : i32
    %172 = tpu.dynamic_rotate %151 by %c4_i32_78 dim 1 : vector<16x256xf32>, i32 -> vector<16x256xf32>
    %c252_i32_79 = arith.constant 252 : i32
    %173 = tpu.dynamic_rotate %151 by %c252_i32_79 dim 1 : vector<16x256xf32>, i32 -> vector<16x256xf32>
    %174 = arith.addf %172, %173 : vector<16x256xf32>
    %cst_80 = arith.constant 0.00759875821 : f32
    %175 = vector.broadcast %cst_80 : f32 to vector<16x256xf32>
    %176 = arith.mulf %175, %174 : vector<16x256xf32>
    %177 = arith.addf %171, %176 : vector<16x256xf32>
    %c5_i32_81 = arith.constant 5 : i32
    %178 = tpu.dynamic_rotate %151 by %c5_i32_81 dim 1 : vector<16x256xf32>, i32 -> vector<16x256xf32>
    %c251_i32_82 = arith.constant 251 : i32
    %179 = tpu.dynamic_rotate %151 by %c251_i32_82 dim 1 : vector<16x256xf32>, i32 -> vector<16x256xf32>
    %180 = arith.addf %178, %179 : vector<16x256xf32>
    %cst_83 = arith.constant 0.00102838012 : f32
    %181 = vector.broadcast %cst_83 : f32 to vector<16x256xf32>
    %182 = arith.mulf %181, %180 : vector<16x256xf32>
    %183 = arith.addf %177, %182 : vector<16x256xf32>
    %184 = arith.truncf %34 : vector<16x256xf32> to vector<16x256xbf16>
    %cst_84 = arith.constant dense<0.000000e+00> : vector<16x256xf32>
    %185 = tpu.matmul %28, %184, %cst_84 {dimension_numbers = #tpu.dot_dimension_numbers<[1], [0], [0], [1], [0, 0, 1, 1], [], []>} : vector<16x16xbf16>, vector<16x256xbf16>, vector<16x256xf32> -> vector<16x256xf32>
    %186 = arith.truncf %35 : vector<16x256xf32> to vector<16x256xbf16>
    %cst_85 = arith.constant dense<0.000000e+00> : vector<16x256xf32>
    %187 = tpu.matmul %29, %186, %cst_85 {dimension_numbers = #tpu.dot_dimension_numbers<[1], [0], [0], [1], [0, 0, 1, 1], [], []>} : vector<16x16xbf16>, vector<16x256xbf16>, vector<16x256xf32> -> vector<16x256xf32>
    %188 = arith.addf %185, %187 : vector<16x256xf32>
    %cst_86 = arith.constant 0.266011715 : f32
    %189 = vector.broadcast %cst_86 : f32 to vector<16x256xf32>
    %190 = arith.mulf %189, %188 : vector<16x256xf32>
    %c1_i32_87 = arith.constant 1 : i32
    %191 = tpu.dynamic_rotate %188 by %c1_i32_87 dim 1 : vector<16x256xf32>, i32 -> vector<16x256xf32>
    %c255_i32_88 = arith.constant 255 : i32
    %192 = tpu.dynamic_rotate %188 by %c255_i32_88 dim 1 : vector<16x256xf32>, i32 -> vector<16x256xf32>
    %193 = arith.addf %191, %192 : vector<16x256xf32>
    %cst_89 = arith.constant 0.213005543 : f32
    %194 = vector.broadcast %cst_89 : f32 to vector<16x256xf32>
    %195 = arith.mulf %194, %193 : vector<16x256xf32>
    %196 = arith.addf %190, %195 : vector<16x256xf32>
    %c2_i32_90 = arith.constant 2 : i32
    %197 = tpu.dynamic_rotate %188 by %c2_i32_90 dim 1 : vector<16x256xf32>, i32 -> vector<16x256xf32>
    %c254_i32_91 = arith.constant 254 : i32
    %198 = tpu.dynamic_rotate %188 by %c254_i32_91 dim 1 : vector<16x256xf32>, i32 -> vector<16x256xf32>
    %199 = arith.addf %197, %198 : vector<16x256xf32>
    %cst_92 = arith.constant 0.109360687 : f32
    %200 = vector.broadcast %cst_92 : f32 to vector<16x256xf32>
    %201 = arith.mulf %200, %199 : vector<16x256xf32>
    %202 = arith.addf %196, %201 : vector<16x256xf32>
    %c3_i32_93 = arith.constant 3 : i32
    %203 = tpu.dynamic_rotate %188 by %c3_i32_93 dim 1 : vector<16x256xf32>, i32 -> vector<16x256xf32>
    %c253_i32_94 = arith.constant 253 : i32
    %204 = tpu.dynamic_rotate %188 by %c253_i32_94 dim 1 : vector<16x256xf32>, i32 -> vector<16x256xf32>
    %205 = arith.addf %203, %204 : vector<16x256xf32>
    %cst_95 = arith.constant 0.0360007733 : f32
    %206 = vector.broadcast %cst_95 : f32 to vector<16x256xf32>
    %207 = arith.mulf %206, %205 : vector<16x256xf32>
    %208 = arith.addf %202, %207 : vector<16x256xf32>
    %c4_i32_96 = arith.constant 4 : i32
    %209 = tpu.dynamic_rotate %188 by %c4_i32_96 dim 1 : vector<16x256xf32>, i32 -> vector<16x256xf32>
    %c252_i32_97 = arith.constant 252 : i32
    %210 = tpu.dynamic_rotate %188 by %c252_i32_97 dim 1 : vector<16x256xf32>, i32 -> vector<16x256xf32>
    %211 = arith.addf %209, %210 : vector<16x256xf32>
    %cst_98 = arith.constant 0.00759875821 : f32
    %212 = vector.broadcast %cst_98 : f32 to vector<16x256xf32>
    %213 = arith.mulf %212, %211 : vector<16x256xf32>
    %214 = arith.addf %208, %213 : vector<16x256xf32>
    %c5_i32_99 = arith.constant 5 : i32
    %215 = tpu.dynamic_rotate %188 by %c5_i32_99 dim 1 : vector<16x256xf32>, i32 -> vector<16x256xf32>
    %c251_i32_100 = arith.constant 251 : i32
    %216 = tpu.dynamic_rotate %188 by %c251_i32_100 dim 1 : vector<16x256xf32>, i32 -> vector<16x256xf32>
    %217 = arith.addf %215, %216 : vector<16x256xf32>
    %cst_101 = arith.constant 0.00102838012 : f32
    %218 = vector.broadcast %cst_101 : f32 to vector<16x256xf32>
    %219 = arith.mulf %218, %217 : vector<16x256xf32>
    %220 = arith.addf %214, %219 : vector<16x256xf32>
    %cst_102 = arith.constant 5.000000e-01 : f32
    %221 = vector.broadcast %cst_102 : f32 to vector<16x256xf32>
    %222 = arith.addf %72, %221 : vector<16x256xf32>
    %cst_103 = arith.constant 5.000000e-01 : f32
    %223 = vector.broadcast %cst_103 : f32 to vector<16x256xf32>
    %224 = arith.addf %109, %223 : vector<16x256xf32>
    %225 = arith.mulf %72, %72 : vector<16x256xf32>
    %226 = arith.subf %146, %225 : vector<16x256xf32>
    %227 = arith.mulf %109, %109 : vector<16x256xf32>
    %228 = arith.subf %183, %227 : vector<16x256xf32>
    %229 = arith.mulf %72, %109 : vector<16x256xf32>
    %230 = arith.subf %220, %229 : vector<16x256xf32>
    %cst_104 = arith.constant 2.000000e+00 : f32
    %231 = vector.broadcast %cst_104 : f32 to vector<16x256xf32>
    %232 = arith.mulf %231, %222 : vector<16x256xf32>
    %233 = arith.mulf %232, %224 : vector<16x256xf32>
    %cst_105 = arith.constant 9.99999974E-5 : f32
    %234 = vector.broadcast %cst_105 : f32 to vector<16x256xf32>
    %235 = arith.addf %233, %234 : vector<16x256xf32>
    %cst_106 = arith.constant 2.000000e+00 : f32
    %236 = vector.broadcast %cst_106 : f32 to vector<16x256xf32>
    %237 = arith.mulf %236, %230 : vector<16x256xf32>
    %cst_107 = arith.constant 8.99999984E-4 : f32
    %238 = vector.broadcast %cst_107 : f32 to vector<16x256xf32>
    %239 = arith.addf %237, %238 : vector<16x256xf32>
    %240 = arith.mulf %235, %239 : vector<16x256xf32>
    %241 = arith.mulf %222, %222 : vector<16x256xf32>
    %242 = arith.mulf %224, %224 : vector<16x256xf32>
    %243 = arith.addf %241, %242 : vector<16x256xf32>
    %cst_108 = arith.constant 9.99999974E-5 : f32
    %244 = vector.broadcast %cst_108 : f32 to vector<16x256xf32>
    %245 = arith.addf %243, %244 : vector<16x256xf32>
    %246 = arith.addf %226, %228 : vector<16x256xf32>
    %cst_109 = arith.constant 8.99999984E-4 : f32
    %247 = vector.broadcast %cst_109 : f32 to vector<16x256xf32>
    %248 = arith.addf %246, %247 : vector<16x256xf32>
    %249 = arith.mulf %245, %248 : vector<16x256xf32>
    %250 = tpu.reciprocal %249 {approx = true} : vector<16x256xf32> -> vector<16x256xf32>
    %251 = arith.mulf %240, %250 : vector<16x256xf32>
    %c0_110 = arith.constant 0 : index
    %c0_111 = arith.constant 0 : index
    %252 = vector.load %arg7[%c0_110, %c0_111] : memref<1x256xf32, #tpu.memory_space<vmem>>, vector<1x256xf32>
    %253 = vector.broadcast %252 : vector<1x256xf32> to vector<16x256xf32>
    %254 = arith.mulf %251, %253 : vector<16x256xf32>
    %255 = vector.extract_strided_slice %254 {offsets = [0, 0], sizes = [16, 128], strides = [1, 1]} : vector<16x256xf32> to vector<16x128xf32>
    %256 = vector.extract_strided_slice %254 {offsets = [0, 128], sizes = [16, 128], strides = [1, 1]} : vector<16x256xf32> to vector<16x128xf32>
    %257 = arith.addf %255, %256 : vector<16x128xf32>
    %c16_i32 = arith.constant 16 : i32
    %258 = arith.muli %arg0, %c16_i32 : i32
    %259 = tpu.iota {dimensions = array<i32: 0>} : vector<16x128xi32>
    %260 = vector.broadcast %258 : i32 to vector<16x128xi32>
    %261 = arith.addi %260, %259 : vector<16x128xi32>
    %c6_i32 = arith.constant 6 : i32
    %262 = vector.broadcast %c6_i32 : i32 to vector<16x128xi32>
    %263 = arith.cmpi slt, %261, %262 : vector<16x128xi32>
    %cst_112 = arith.constant 0.000000e+00 : f32
    %264 = vector.broadcast %cst_112 : f32 to vector<16x128xf32>
    %265 = arith.select %263, %257, %264 : vector<16x128xi1>, vector<16x128xf32>
    %266 = vector.extract_strided_slice %265 {offsets = [0, 0], sizes = [8, 128], strides = [1, 1]} : vector<16x128xf32> to vector<8x128xf32>
    %267 = vector.extract_strided_slice %265 {offsets = [8, 0], sizes = [8, 128], strides = [1, 1]} : vector<16x128xf32> to vector<8x128xf32>
    %268 = arith.addf %266, %267 : vector<8x128xf32>
    %269 = vector.shape_cast %268 : vector<8x128xf32> to vector<1x8x128xf32>
    %c0_113 = arith.constant 0 : index
    %c0_114 = arith.constant 0 : index
    %c0_115 = arith.constant 0 : index
    %270 = vector.load %arg8[%c0_113, %c0_114, %c0_115] : memref<1x8x128xf32, #tpu.memory_space<vmem>>, vector<1x8x128xf32>
    tpu.vector_store %arg8[%c0_113, %c0_114, %c0_115], %269 {strides = array<i32>} : memref<1x8x128xf32, #tpu.memory_space<vmem>>, vector<1x8x128xf32>,
    return
  }
  func.func @transform_0(%arg0: i32) -> (i32, i32) {
    %c0_i32 = arith.constant 0 : i32
    %c0_i32_0 = arith.constant 0 : i32
    return %arg0, %c0_i32 : i32, i32
  }
  func.func @transform_1(%arg0: i32) -> (i32, i32) {
    %c1_i32 = arith.constant 1 : i32
    %0 = arith.addi %arg0, %c1_i32 : i32
    %c1_i32_0 = arith.constant 1 : i32
    %1 = arith.muli %0, %c1_i32_0 : i32
    %c0_i32 = arith.constant 0 : i32
    %c0_i32_1 = arith.constant 0 : i32
    return %1, %c0_i32 : i32, i32
  }
  func.func @transform_2(%arg0: i32) -> (i32, i32) {
    %c0_i32 = arith.constant 0 : i32
    %c0_i32_0 = arith.constant 0 : i32
    return %arg0, %c0_i32 : i32, i32
  }
  func.func @transform_3(%arg0: i32) -> (i32, i32) {
    %c1_i32 = arith.constant 1 : i32
    %0 = arith.addi %arg0, %c1_i32 : i32
    %c1_i32_0 = arith.constant 1 : i32
    %1 = arith.muli %0, %c1_i32_0 : i32
    %c0_i32 = arith.constant 0 : i32
    %c0_i32_1 = arith.constant 0 : i32
    return %1, %c0_i32 : i32, i32
  }
  func.func @transform_4(%arg0: i32) -> (i32, i32) {
    %c0_i32 = arith.constant 0 : i32
    %c0_i32_0 = arith.constant 0 : i32
    %c0_i32_1 = arith.constant 0 : i32
    return %c0_i32, %c0_i32_0 : i32, i32
  }
  func.func @transform_5(%arg0: i32) -> (i32, i32) {
    %c0_i32 = arith.constant 0 : i32
    %c0_i32_0 = arith.constant 0 : i32
    %c0_i32_1 = arith.constant 0 : i32
    return %c0_i32, %c0_i32_0 : i32, i32
  }
  func.func @transform_6(%arg0: i32) -> (i32, i32) {
    %c0_i32 = arith.constant 0 : i32
    %c0_i32_0 = arith.constant 0 : i32
    %c0_i32_1 = arith.constant 0 : i32
    return %c0_i32, %c0_i32_0 : i32, i32
  }
  func.func @transform_7(%arg0: i32) -> (i32, i32, i32) {
    %c0_i32 = arith.constant 0 : i32
    %c0_i32_0 = arith.constant 0 : i32
    %c0_i32_1 = arith.constant 0 : i32
    return %arg0, %c0_i32, %c0_i32_0 : i32, i32, i32
  }
}

</mosaic_0001>

<llo_original>
// kernel: ssim_loss.1
$region0: #{ssim_loss.1}
  #allocation0 [shape = 'u32[]', space=smem, size = 0x4, offset = 0x4, fixed_abs, tag = 'smem constant byte address 0x4 - core index']
  #allocation1 [shape = 'u32[144,128]{1,0:T(1,128)}', space=vmem, size = 0x12000, scoped, tag = 'internal scratch']
  %s0 = inlined_call_operand.vmem [shape: f32[32,256], index: 0, kind: input, shape index: {}, may-alias: {0,1}]
  %s1 = inlined_call_operand.vmem [shape: f32[32,256], index: 1, kind: input, shape index: {}, may-alias: {0,1}]
  %s2 = inlined_call_operand.vmem [shape: f32[32,256], index: 2, kind: input, shape index: {}, may-alias: {2,3}]
  %s3 = inlined_call_operand.vmem [shape: f32[32,256], index: 3, kind: input, shape index: {}, may-alias: {2,3}]
  %s4 = inlined_call_operand.vmem [shape: bf16[16,16], index: 4, kind: input, shape index: {}]
  %s5 = inlined_call_operand.vmem [shape: bf16[16,16], index: 5, kind: input, shape index: {}]
  %s6 = inlined_call_operand.vmem [shape: f32[1,256], index: 6, kind: input, shape index: {}]
  %s7 = inlined_call_operand.vmem [shape: f32[1,8,128], index: 7, kind: output, shape index: {}]
  %s8 = sld [smem:[#allocation0]]
  $region38: #{ssim_loss.1} parent=0
    _
  %s10 = ssub.s32 1, %s8
  %s11 = scalar_select 0, %s10, %s8
  // Predicated region
  $region2: #{ssim_loss.1} parent=0 // pred_check
    _
  $region3: #{ssim_loss.1} parent=0 // pred_check_branch
    %13 = sbr.rel (0) target = $region5
  $region4: #{ssim_loss.1} parent=0 // pred_region
    _
  $region5: #{ssim_loss.1} parent=0 // pred_fallthru
    _
  // Predicated region
  $region6: #{ssim_loss.1} parent=0 // pred_check
    _
  $region7: #{ssim_loss.1} parent=0 // pred_check_branch
    %15 = sbr.rel (0) target = $region9
  $region8: #{ssim_loss.1} parent=0 // pred_region
    %s16 = sadd.s32 0, 1
    %s17 = smul.u32 2, %s16
    %p18 = scmp.lt.s32.totalorder %s17, 3
    %s19 = scalar_select %p18, %s17, 3
    %s20 = smul.addr %s19, 2
    %s21 = smul.addr %s20, 8
    %s22 = scalar_lea.vmem %s1, %s21
    %s23 = sadd.s32 0, 1
    %s24 = smul.u32 2, %s23
  $region9: #{ssim_loss.1} parent=0 // pred_fallthru
    _
  // Predicated region
  $region10: #{ssim_loss.1} parent=0 // pred_check
    _
  $region11: #{ssim_loss.1} parent=0 // pred_check_branch
    %26 = sbr.rel (0) target = $region13
  $region12: #{ssim_loss.1} parent=0 // pred_region
    _
  $region13: #{ssim_loss.1} parent=0 // pred_fallthru
    _
  // Predicated region
  $region14: #{ssim_loss.1} parent=0 // pred_check
    _
  $region15: #{ssim_loss.1} parent=0 // pred_check_branch
    %28 = sbr.rel (0) target = $region17
  $region16: #{ssim_loss.1} parent=0 // pred_region
    %s29 = sadd.s32 0, 1
    %s30 = smul.u32 2, %s29
    %p31 = scmp.lt.s32.totalorder %s30, 3
    %s32 = scalar_select %p31, %s30, 3
    %s33 = smul.addr %s32, 2
    %s34 = smul.addr %s33, 8
    %s35 = scalar_lea.vmem %s3, %s34
    %s36 = sadd.s32 0, 1
    %s37 = smul.u32 2, %s36
  $region17: #{ssim_loss.1} parent=0 // pred_fallthru
    _
  // Predicated region
  $region18: #{ssim_loss.1} parent=0 // pred_check
    _
  $region19: #{ssim_loss.1} parent=0 // pred_check_branch
    %39 = sbr.rel (0) target = $region21
  $region20: #{ssim_loss.1} parent=0 // pred_region
    _
  $region21: #{ssim_loss.1} parent=0 // pred_fallthru
    _
  // Predicated region
  $region22: #{ssim_loss.1} parent=0 // pred_check
    _
  $region23: #{ssim_loss.1} parent=0 // pred_check_branch
    %41 = sbr.rel (0) target = $region25
  $region24: #{ssim_loss.1} parent=0 // pred_region
    _
  $region25: #{ssim_loss.1} parent=0 // pred_fallthru
    _
  // Predicated region
  $region26: #{ssim_loss.1} parent=0 // pred_check
    _
  $region27: #{ssim_loss.1} parent=0 // pred_check_branch
    %43 = sbr.rel (0) target = $region29
  $region28: #{ssim_loss.1} parent=0 // pred_region
    _
  $region29: #{ssim_loss.1} parent=0 // pred_fallthru
    _
  %s44 = sadd.s32 0, 1
  %s45 = smul.u32 2, %s44
  %p46 = scmp.lt.s32.totalorder %s45, 3
  %s47 = scalar_select %p46, %s45, 3
  %s48 = smul.addr %s47, 2
  %s49 = smul.addr %s48, 8
  %s50 = scalar_lea.vmem %s1, %s49
  %s51 = sadd.s32 0, 1
  %s52 = smul.u32 2, %s51
  %p53 = scmp.lt.s32.totalorder %s52, 3
  %s54 = scalar_select %p53, %s52, 3
  %s55 = smul.addr %s54, 2
  %s56 = smul.addr %s55, 8
  %s57 = scalar_lea.vmem %s3, %s56
  %s58 = sadd.s32 0, 1
  %s59 = smul.u32 2, %s58
  %p60 = scmp.lt.s32.totalorder %s59, 3
  %s61 = scalar_select %p60, %s59, 3
  %s62 = smul.addr %s61, 2
  %s63 = smul.addr %s62, 8
  %s64 = scalar_lea.vmem %s1, %s63
  %s65 = sadd.s32 0, 1
  %s66 = smul.u32 2, %s65
  %s67 = sadd.s32 0, 1
  %s68 = smul.u32 2, %s67
  %p69 = scmp.lt.s32.totalorder %s68, 3
  %s70 = scalar_select %p69, %s68, 3
  %s71 = smul.addr %s70, 2
  %s72 = smul.addr %s71, 8
  %s73 = scalar_lea.vmem %s3, %s72
  %s74 = sadd.s32 0, 1
  %s75 = smul.u32 2, %s74
  %v77 = vld [vmem:[%s0] sm:$0xff]
  %v78 = vld [vmem:[%s0 + $0x8] sm:$0xff]
  %v79 = vld [vmem:[%s0 + $0x10] sm:$0xff]
  %v80 = vld [vmem:[%s0 + $0x18] sm:$0xff]
  %v81 = vmax.f32 %v77, 0.0
  %v82 = vmax.f32 %v78, 0.0
  %v83 = vmax.f32 %v79, 0.0
  %v84 = vmax.f32 %v80, 0.0
  %v85 = vmin.f32 %v81, 1.0
  %v86 = vmin.f32 %v82, 1.0
  %v87 = vmin.f32 %v83, 1.0
  %v88 = vmin.f32 %v84, 1.0
  %v89 = vsub.f32 %v85, 0.5
  %v90 = vsub.f32 %v86, 0.5
  %v91 = vsub.f32 %v87, 0.5
  %v92 = vsub.f32 %v88, 0.5
  %v93 = vld [vmem:[%s2] sm:$0xff]
  %v94 = vld [vmem:[%s2 + $0x8] sm:$0xff]
  %v95 = vld [vmem:[%s2 + $0x10] sm:$0xff]
  %v96 = vld [vmem:[%s2 + $0x18] sm:$0xff]
  %v97 = vmax.f32 %v93, 0.0
  %v98 = vmax.f32 %v94, 0.0
  %v99 = vmax.f32 %v95, 0.0
  %v100 = vmax.f32 %v96, 0.0
  %v101 = vmin.f32 %v97, 1.0
  %v102 = vmin.f32 %v98, 1.0
  %v103 = vmin.f32 %v99, 1.0
  %v104 = vmin.f32 %v100, 1.0
  %v105 = vsub.f32 %v101, 0.5
  %v106 = vsub.f32 %v102, 0.5
  %v107 = vsub.f32 %v103, 0.5
  %v108 = vsub.f32 %v104, 0.5
  %v109 = vld [vmem:[%s64] sm:$0xff]
  %v110 = vld [vmem:[%s64 + $0x8] sm:$0xff]
  %v111 = vld [vmem:[%s64 + $0x10] sm:$0xff]
  %v112 = vld [vmem:[%s64 + $0x18] sm:$0xff]
  %v113 = vmax.f32 %v109, 0.0
  %v114 = vmax.f32 %v110, 0.0
  %v115 = vmax.f32 %v111, 0.0
  %v116 = vmax.f32 %v112, 0.0
  %v117 = vmin.f32 %v113, 1.0
  %v118 = vmin.f32 %v114, 1.0
  %v119 = vmin.f32 %v115, 1.0
  %v120 = vmin.f32 %v116, 1.0
  %v121 = vsub.f32 %v117, 0.5
  %v122 = vsub.f32 %v118, 0.5
  %v123 = vsub.f32 %v119, 0.5
  %v124 = vsub.f32 %v120, 0.5
  %v125 = vld [vmem:[%s73] sm:$0xff]
  %v126 = vld [vmem:[%s73 + $0x8] sm:$0xff]
  %v127 = vld [vmem:[%s73 + $0x10] sm:$0xff]
  %v128 = vld [vmem:[%s73 + $0x18] sm:$0xff]
  %v129 = vmax.f32 %v125, 0.0
  %v130 = vmax.f32 %v126, 0.0
  %v131 = vmax.f32 %v127, 0.0
  %v132 = vmax.f32 %v128, 0.0
  %v133 = vmin.f32 %v129, 1.0
  %v134 = vmin.f32 %v130, 1.0
  %v135 = vmin.f32 %v131, 1.0
  %v136 = vmin.f32 %v132, 1.0
  %v137 = vsub.f32 %v133, 0.5
  %v138 = vsub.f32 %v134, 0.5
  %v139 = vsub.f32 %v135, 0.5
  %v140 = vsub.f32 %v136, 0.5
  %v141 = vld [vmem:[%s4] sm:$0xf]
  %v142 = vld [vmem:[%s4 + $0x4] sm:$0xf]
  %v143 = vld [vmem:[%s5] sm:$0xf]
  %v144 = vld [vmem:[%s5 + $0x4] sm:$0xf]
  %v145 = vmul.f32 %v89, %v89
  %v146 = vmul.f32 %v90, %v90
  %v147 = vmul.f32 %v91, %v91
  %v148 = vmul.f32 %v92, %v92
  %v149 = vmul.f32 %v121, %v121
  %v150 = vmul.f32 %v122, %v122
  %v151 = vmul.f32 %v123, %v123
  %v152 = vmul.f32 %v124, %v124
  %v153 = vmul.f32 %v105, %v105
  %v154 = vmul.f32 %v106, %v106
  %v155 = vmul.f32 %v107, %v107
  %v156 = vmul.f32 %v108, %v108
  %v157 = vmul.f32 %v137, %v137
  %v158 = vmul.f32 %v138, %v138
  %v159 = vmul.f32 %v139, %v139
  %v160 = vmul.f32 %v140, %v140
  %v161 = vmul.f32 %v89, %v105
  %v162 = vmul.f32 %v90, %v106
  %v163 = vmul.f32 %v91, %v107
  %v164 = vmul.f32 %v92, %v108
  %v165 = vmul.f32 %v121, %v137
  %v166 = vmul.f32 %v122, %v138
  %v167 = vmul.f32 %v123, %v139
  %v168 = vmul.f32 %v124, %v140
  %v169 = vpack.c.bf16 %v91, %v89
  %v170 = vpack.c.bf16 %v92, %v90
  %v171 = vpack.c.bf16 %v123, %v121
  %v172 = vpack.c.bf16 %v124, %v122
  %v175 = vunpack.c.l.b16 %v143
  %v176 = vunpack.c.l.b16 %v144
  %v177 = vpack.c.b16 %v176, %v175
  %vm178 = vcmask 130048
  %v180 = vsel %vm178, %v177, 0
  %182 = vmatprep.subr.bf16.mxu0 %v172
  %183 = vmatpush1.bf16.msra.mxu0 %v171
  %184 = vmatprep.subr.bf16.mxu0 0
  %185 = vmatpush1.bf16.msra.mxu0 0
  %186 = vmatprep.subr.bf16.mxu0 0
  %187 = vmatpush1.bf16.msra.mxu0 0
  %188 = vmatprep.subr.bf16.mxu0 0
  %189 = vmatpush1.bf16.msra.mxu0 0
  %190 = vmatprep.subr.bf16.mxu0 0
  %191 = vmatpush1.bf16.msra.mxu0 0
  %192 = vmatprep.subr.bf16.mxu0 0
  %193 = vmatpush1.bf16.msra.mxu0 0
  %194 = vmatprep.subr.bf16.mxu0 0
  %195 = vmatpush1.bf16.msra.mxu0 0
  %196 = vmatprep.subr.bf16.mxu0 0
  %197 = vmatpush1.bf16.msra.mxu0 0
  %198 = vmatprep.subr.bf16.mxu0 0
  %199 = vmatpush1.bf16.msra.mxu0 0
  %200 = vmatprep.subr.bf16.mxu0 0
  %201 = vmatpush1.bf16.msra.mxu0 0
  %202 = vmatprep.subr.bf16.mxu0 0
  %203 = vmatpush1.bf16.msra.mxu0 0
  %204 = vmatprep.subr.bf16.mxu0 0
  %205 = vmatpush1.bf16.msra.mxu0 0
  %206 = vmatprep.subr.bf16.mxu0 0
  %207 = vmatpush1.bf16.msra.mxu0 0
  %208 = vmatprep.subr.bf16.mxu0 0
  %209 = vmatpush1.bf16.msra.mxu0 0
  %210 = vmatprep.subr.bf16.mxu0 0
  %211 = vmatpush1.bf16.msra.mxu0 0
  %212 = vmatprep.subr.bf16.mxu0 0
  %213 = vmatpush1.bf16.msra.mxu0 0
  %214 = vmatprep.mubr.bf16.mxu0 0
  %215 = vmatmul.mubr.bf16.gmra.mrb[0].mxu0 %v180
  %v216 = vpop.f32.mrb[0].mxu0
  %v217 = vadd.f32 0.0, %v216
  %v218 = vpop.f32.mrb[0].mxu0
  %v219 = vadd.f32 0.0, %v218
  %v220 = vpop.f32.mrb[0].mxu0
  %v221 = vadd.f32 0.0, %v220
  %v222 = vpop.f32.mrb[0].mxu0
  %v223 = vadd.f32 0.0, %v222
  %224 = vdwg.mxu0
  %v227 = vunpack.c.l.b16 %v141
  %v228 = vunpack.c.l.b16 %v142
  %v229 = vpack.c.b16 %v228, %v227
  %v231 = vsel %vm178, %v229, 0
  %233 = vmatprep.subr.bf16.mxu0 %v170
  %234 = vmatpush1.bf16.msra.mxu0 %v169
  %235 = vmatprep.subr.bf16.mxu0 0
  %236 = vmatpush1.bf16.msra.mxu0 0
  %237 = vmatprep.subr.bf16.mxu0 0
  %238 = vmatpush1.bf16.msra.mxu0 0
  %239 = vmatprep.subr.bf16.mxu0 0
  %240 = vmatpush1.bf16.msra.mxu0 0
  %241 = vmatprep.subr.bf16.mxu0 0
  %242 = vmatpush1.bf16.msra.mxu0 0
  %243 = vmatprep.subr.bf16.mxu0 0
  %244 = vmatpush1.bf16.msra.mxu0 0
  %245 = vmatprep.subr.bf16.mxu0 0
  %246 = vmatpush1.bf16.msra.mxu0 0
  %247 = vmatprep.subr.bf16.mxu0 0
  %248 = vmatpush1.bf16.msra.mxu0 0
  %249 = vmatprep.subr.bf16.mxu0 0
  %250 = vmatpush1.bf16.msra.mxu0 0
  %251 = vmatprep.subr.bf16.mxu0 0
  %252 = vmatpush1.bf16.msra.mxu0 0
  %253 = vmatprep.subr.bf16.mxu0 0
  %254 = vmatpush1.bf16.msra.mxu0 0
  %255 = vmatprep.subr.bf16.mxu0 0
  %256 = vmatpush1.bf16.msra.mxu0 0
  %257 = vmatprep.subr.bf16.mxu0 0
  %258 = vmatpush1.bf16.msra.mxu0 0
  %259 = vmatprep.subr.bf16.mxu0 0
  %260 = vmatpush1.bf16.msra.mxu0 0
  %261 = vmatprep.subr.bf16.mxu0 0
  %262 = vmatpush1.bf16.msra.mxu0 0
  %263 = vmatprep.subr.bf16.mxu0 0
  %264 = vmatpush1.bf16.msra.mxu0 0
  %265 = vmatprep.mubr.bf16.mxu0 0
  %266 = vmatmul.mubr.bf16.gmra.mrb[0].mxu0 %v231
  %v267 = vpop.f32.mrb[0].mxu0
  %v268 = vadd.f32 %v217, %v267
  %v269 = vpop.f32.mrb[0].mxu0
  %v270 = vadd.f32 %v219, %v269
  %v271 = vpop.f32.mrb[0].mxu0
  %v272 = vadd.f32 %v221, %v271
  %v273 = vpop.f32.mrb[0].mxu0
  %v274 = vadd.f32 %v223, %v273
  %275 = vdwg.mxu0
  %v276 = vmul.f32 %v268, 0.26601171
  %v277 = vmul.f32 %v270, 0.26601171
  %v278 = vmul.f32 %v272, 0.26601171
  %v279 = vmul.f32 %v274, 0.26601171
  %280 = vrot.lane.b32.xlu0 %v268, 1
  %v281 = vpop.permute.xlu0 %280
  %282 = vrot.lane.b32.xlu0 %v272, 1
  %v283 = vpop.permute.xlu0 %282
  %284 = vrot.lane.b32.xlu0 %v270, 1
  %v285 = vpop.permute.xlu0 %284
  %286 = vrot.lane.b32.xlu0 %v274, 1
  %v287 = vpop.permute.xlu0 %286
  %v288 = vlaneseq
  %v289 = vand.u32 %v288, 127
  %vm290 = vcmp.lt.s32.totalorder %v289, 1
  %v291 = vsel %vm290, %v281, %v285
  %v292 = vsel %vm290, %v283, %v287
  %v293 = vsel %vm290, %v285, %v281
  %v294 = vsel %vm290, %v287, %v283
  %295 = vrot.lane.b32.xlu0 %v268, 127
  %v296 = vpop.permute.xlu0 %295
  %297 = vrot.lane.b32.xlu0 %v272, 127
  %v298 = vpop.permute.xlu0 %297
  %299 = vrot.lane.b32.xlu0 %v270, 127
  %v300 = vpop.permute.xlu0 %299
  %301 = vrot.lane.b32.xlu0 %v274, 127
  %v302 = vpop.permute.xlu0 %301
  %vm303 = vcmp.lt.s32.totalorder %v289, 127
  %v304 = vsel %vm303, %v296, %v300
  %v305 = vsel %vm303, %v298, %v302
  %v306 = vsel %vm303, %v300, %v296
  %v307 = vsel %vm303, %v302, %v298
  %v308 = vadd.f32 %v293, %v304
  %v309 = vadd.f32 %v291, %v306
  %v310 = vadd.f32 %v294, %v305
  %v311 = vadd.f32 %v292, %v307
  %v312 = vmul.f32 %v308, 0.21300554
  %v313 = vmul.f32 %v309, 0.21300554
  %v314 = vmul.f32 %v310, 0.21300554
  %v315 = vmul.f32 %v311, 0.21300554
  %v316 = vadd.f32 %v276, %v312
  %v317 = vadd.f32 %v277, %v313
  %v318 = vadd.f32 %v278, %v314
  %v319 = vadd.f32 %v279, %v315
  %320 = vrot.lane.b32.xlu0 %v268, 2
  %v321 = vpop.permute.xlu0 %320
  %322 = vrot.lane.b32.xlu0 %v272, 2
  %v323 = vpop.permute.xlu0 %322
  %324 = vrot.lane.b32.xlu0 %v270, 2
  %v325 = vpop.permute.xlu0 %324
  %326 = vrot.lane.b32.xlu0 %v274, 2
  %v327 = vpop.permute.xlu0 %326
  %vm328 = vcmp.lt.s32.totalorder %v289, 2
  %v329 = vsel %vm328, %v321, %v325
  %v330 = vsel %vm328, %v323, %v327
  %v331 = vsel %vm328, %v325, %v321
  %v332 = vsel %vm328, %v327, %v323
  %333 = vrot.lane.b32.xlu0 %v268, 126
  %v334 = vpop.permute.xlu0 %333
  %335 = vrot.lane.b32.xlu0 %v272, 126
  %v336 = vpop.permute.xlu0 %335
  %337 = vrot.lane.b32.xlu0 %v270, 126
  %v338 = vpop.permute.xlu0 %337
  %339 = vrot.lane.b32.xlu0 %v274, 126
  %v340 = vpop.permute.xlu0 %339
  %vm341 = vcmp.lt.s32.totalorder %v289, 126
  %v342 = vsel %vm341, %v334, %v338
  %v343 = vsel %vm341, %v336, %v340
  %v344 = vsel %vm341, %v338, %v334
  %v345 = vsel %vm341, %v340, %v336
  %v346 = vadd.f32 %v331, %v342
  %v347 = vadd.f32 %v329, %v344
  %v348 = vadd.f32 %v332, %v343
  %v349 = vadd.f32 %v330, %v345
  %v350 = vmul.f32 %v346, 0.10936069
  %v351 = vmul.f32 %v347, 0.10936069
  %v352 = vmul.f32 %v348, 0.10936069
  %v353 = vmul.f32 %v349, 0.10936069
  %v354 = vadd.f32 %v316, %v350
  %v355 = vadd.f32 %v317, %v351
  %v356 = vadd.f32 %v318, %v352
  %v357 = vadd.f32 %v319, %v353
  %358 = vrot.lane.b32.xlu0 %v268, 3
  %v359 = vpop.permute.xlu0 %358
  %360 = vrot.lane.b32.xlu0 %v272, 3
  %v361 = vpop.permute.xlu0 %360
  %362 = vrot.lane.b32.xlu0 %v270, 3
  %v363 = vpop.permute.xlu0 %362
  %364 = vrot.lane.b32.xlu0 %v274, 3
  %v365 = vpop.permute.xlu0 %364
  %vm366 = vcmp.lt.s32.totalorder %v289, 3
  %v367 = vsel %vm366, %v359, %v363
  %v368 = vsel %vm366, %v361, %v365
  %v369 = vsel %vm366, %v363, %v359
  %v370 = vsel %vm366, %v365, %v361
  %371 = vrot.lane.b32.xlu0 %v268, 125
  %v372 = vpop.permute.xlu0 %371
  %373 = vrot.lane.b32.xlu0 %v272, 125
  %v374 = vpop.permute.xlu0 %373
  %375 = vrot.lane.b32.xlu0 %v270, 125
  %v376 = vpop.permute.xlu0 %375
  %377 = vrot.lane.b32.xlu0 %v274, 125
  %v378 = vpop.permute.xlu0 %377
  %vm379 = vcmp.lt.s32.totalorder %v289, 125
  %v380 = vsel %vm379, %v372, %v376
  %v381 = vsel %vm379, %v374, %v378
  %v382 = vsel %vm379, %v376, %v372
  %v383 = vsel %vm379, %v378, %v374
  %v384 = vadd.f32 %v369, %v380
  %v385 = vadd.f32 %v367, %v382
  %v386 = vadd.f32 %v370, %v381
  %v387 = vadd.f32 %v368, %v383
  %v388 = vmul.f32 %v384, 0.036000773
  %v389 = vmul.f32 %v385, 0.036000773
  %v390 = vmul.f32 %v386, 0.036000773
  %v391 = vmul.f32 %v387, 0.036000773
  %v392 = vadd.f32 %v354, %v388
  %v393 = vadd.f32 %v355, %v389
  %v394 = vadd.f32 %v356, %v390
  %v395 = vadd.f32 %v357, %v391
  %396 = vrot.lane.b32.xlu0 %v268, 4
  %v397 = vpop.permute.xlu0 %396
  %398 = vrot.lane.b32.xlu0 %v272, 4
  %v399 = vpop.permute.xlu0 %398
  %400 = vrot.lane.b32.xlu0 %v270, 4
  %v401 = vpop.permute.xlu0 %400
  %402 = vrot.lane.b32.xlu0 %v274, 4
  %v403 = vpop.permute.xlu0 %402
  %vm404 = vcmp.lt.s32.totalorder %v289, 4
  %v405 = vsel %vm404, %v397, %v401
  %v406 = vsel %vm404, %v399, %v403
  %v407 = vsel %vm404, %v401, %v397
  %v408 = vsel %vm404, %v403, %v399
  %409 = vrot.lane.b32.xlu0 %v268, 124
  %v410 = vpop.permute.xlu0 %409
  %411 = vrot.lane.b32.xlu0 %v272, 124
  %v412 = vpop.permute.xlu0 %411
  %413 = vrot.lane.b32.xlu0 %v270, 124
  %v414 = vpop.permute.xlu0 %413
  %415 = vrot.lane.b32.xlu0 %v274, 124
  %v416 = vpop.permute.xlu0 %415
  %vm417 = vcmp.lt.s32.totalorder %v289, 124
  %v418 = vsel %vm417, %v410, %v414
  %v419 = vsel %vm417, %v412, %v416
  %v420 = vsel %vm417, %v414, %v410
  %v421 = vsel %vm417, %v416, %v412
  %v422 = vadd.f32 %v407, %v418
  %v423 = vadd.f32 %v405, %v420
  %v424 = vadd.f32 %v408, %v419
  %v425 = vadd.f32 %v406, %v421
  %v426 = vmul.f32 %v422, 0.007598758
  %v427 = vmul.f32 %v423, 0.007598758
  %v428 = vmul.f32 %v424, 0.007598758
  %v429 = vmul.f32 %v425, 0.007598758
  %v430 = vadd.f32 %v392, %v426
  %v431 = vadd.f32 %v393, %v427
  %v432 = vadd.f32 %v394, %v428
  %v433 = vadd.f32 %v395, %v429
  %434 = vrot.lane.b32.xlu0 %v268, 5
  %v435 = vpop.permute.xlu0 %434
  %436 = vrot.lane.b32.xlu0 %v272, 5
  %v437 = vpop.permute.xlu0 %436
  %438 = vrot.lane.b32.xlu0 %v270, 5
  %v439 = vpop.permute.xlu0 %438
  %440 = vrot.lane.b32.xlu0 %v274, 5
  %v441 = vpop.permute.xlu0 %440
  %vm442 = vcmp.lt.s32.totalorder %v289, 5
  %v443 = vsel %vm442, %v435, %v439
  %v444 = vsel %vm442, %v437, %v441
  %v445 = vsel %vm442, %v439, %v435
  %v446 = vsel %vm442, %v441, %v437
  %447 = vrot.lane.b32.xlu0 %v268, 123
  %v448 = vpop.permute.xlu0 %447
  %449 = vrot.lane.b32.xlu0 %v272, 123
  %v450 = vpop.permute.xlu0 %449
  %451 = vrot.lane.b32.xlu0 %v270, 123
  %v452 = vpop.permute.xlu0 %451
  %453 = vrot.lane.b32.xlu0 %v274, 123
  %v454 = vpop.permute.xlu0 %453
  %vm455 = vcmp.lt.s32.totalorder %v289, 123
  %v456 = vsel %vm455, %v448, %v452
  %v457 = vsel %vm455, %v450, %v454
  %v458 = vsel %vm455, %v452, %v448
  %v459 = vsel %vm455, %v454, %v450
  %v460 = vadd.f32 %v445, %v456
  %v461 = vadd.f32 %v443, %v458
  %v462 = vadd.f32 %v446, %v457
  %v463 = vadd.f32 %v444, %v459
  %v464 = vmul.f32 %v460, 0.0010283801
  %v465 = vmul.f32 %v461, 0.0010283801
  %v466 = vmul.f32 %v462, 0.0010283801
  %v467 = vmul.f32 %v463, 0.0010283801
  %v468 = vadd.f32 %v430, %v464
  %v469 = vadd.f32 %v431, %v465
  %v470 = vadd.f32 %v432, %v466
  %v471 = vadd.f32 %v433, %v467
  %v472 = vpack.c.bf16 %v107, %v105
  %v473 = vpack.c.bf16 %v108, %v106
  %v474 = vpack.c.bf16 %v139, %v137
  %v475 = vpack.c.bf16 %v140, %v138
  %476 = vmatprep.subr.bf16.mxu0 %v475
  %477 = vmatpush1.bf16.msra.mxu0 %v474
  %478 = vmatprep.subr.bf16.mxu0 0
  %479 = vmatpush1.bf16.msra.mxu0 0
  %480 = vmatprep.subr.bf16.mxu0 0
  %481 = vmatpush1.bf16.msra.mxu0 0
  %482 = vmatprep.subr.bf16.mxu0 0
  %483 = vmatpush1.bf16.msra.mxu0 0
  %484 = vmatprep.subr.bf16.mxu0 0
  %485 = vmatpush1.bf16.msra.mxu0 0
  %486 = vmatprep.subr.bf16.mxu0 0
  %487 = vmatpush1.bf16.msra.mxu0 0
  %488 = vmatprep.subr.bf16.mxu0 0
  %489 = vmatpush1.bf16.msra.mxu0 0
  %490 = vmatprep.subr.bf16.mxu0 0
  %491 = vmatpush1.bf16.msra.mxu0 0
  %492 = vmatprep.subr.bf16.mxu0 0
  %493 = vmatpush1.bf16.msra.mxu0 0
  %494 = vmatprep.subr.bf16.mxu0 0
  %495 = vmatpush1.bf16.msra.mxu0 0
  %496 = vmatprep.subr.bf16.mxu0 0
  %497 = vmatpush1.bf16.msra.mxu0 0
  %498 = vmatprep.subr.bf16.mxu0 0
  %499 = vmatpush1.bf16.msra.mxu0 0
  %500 = vmatprep.subr.bf16.mxu0 0
  %501 = vmatpush1.bf16.msra.mxu0 0
  %502 = vmatprep.subr.bf16.mxu0 0
  %503 = vmatpush1.bf16.msra.mxu0 0
  %504 = vmatprep.subr.bf16.mxu0 0
  %505 = vmatpush1.bf16.msra.mxu0 0
  %506 = vmatprep.subr.bf16.mxu0 0
  %507 = vmatpush1.bf16.msra.mxu0 0
  %508 = vmatprep.mubr.bf16.mxu0 0
  %509 = vmatmul.mubr.bf16.gmra.mrb[0].mxu0 %v180
  %v510 = vpop.f32.mrb[0].mxu0
  %v511 = vadd.f32 0.0, %v510
  %v512 = vpop.f32.mrb[0].mxu0
  %v513 = vadd.f32 0.0, %v512
  %v514 = vpop.f32.mrb[0].mxu0
  %v515 = vadd.f32 0.0, %v514
  %v516 = vpop.f32.mrb[0].mxu0
  %v517 = vadd.f32 0.0, %v516
  %518 = vdwg.mxu0
  %519 = vmatprep.subr.bf16.mxu0 %v473
  %520 = vmatpush1.bf16.msra.mxu0 %v472
  %521 = vmatprep.subr.bf16.mxu0 0
  %522 = vmatpush1.bf16.msra.mxu0 0
  %523 = vmatprep.subr.bf16.mxu0 0
  %524 = vmatpush1.bf16.msra.mxu0 0
  %525 = vmatprep.subr.bf16.mxu0 0
  %526 = vmatpush1.bf16.msra.mxu0 0
  %527 = vmatprep.subr.bf16.mxu0 0
  %528 = vmatpush1.bf16.msra.mxu0 0
  %529 = vmatprep.subr.bf16.mxu0 0
  %530 = vmatpush1.bf16.msra.mxu0 0
  %531 = vmatprep.subr.bf16.mxu0 0
  %532 = vmatpush1.bf16.msra.mxu0 0
  %533 = vmatprep.subr.bf16.mxu0 0
  %534 = vmatpush1.bf16.msra.mxu0 0
  %535 = vmatprep.subr.bf16.mxu0 0
  %536 = vmatpush1.bf16.msra.mxu0 0
  %537 = vmatprep.subr.bf16.mxu0 0
  %538 = vmatpush1.bf16.msra.mxu0 0
  %539 = vmatprep.subr.bf16.mxu0 0
  %540 = vmatpush1.bf16.msra.mxu0 0
  %541 = vmatprep.subr.bf16.mxu0 0
  %542 = vmatpush1.bf16.msra.mxu0 0
  %543 = vmatprep.subr.bf16.mxu0 0
  %544 = vmatpush1.bf16.msra.mxu0 0
  %545 = vmatprep.subr.bf16.mxu0 0
  %546 = vmatpush1.bf16.msra.mxu0 0
  %547 = vmatprep.subr.bf16.mxu0 0
  %548 = vmatpush1.bf16.msra.mxu0 0
  %549 = vmatprep.subr.bf16.mxu0 0
  %550 = vmatpush1.bf16.msra.mxu0 0
  %551 = vmatprep.mubr.bf16.mxu0 0
  %552 = vmatmul.mubr.bf16.gmra.mrb[0].mxu0 %v231
  %v553 = vpop.f32.mrb[0].mxu0
  %v554 = vadd.f32 %v511, %v553
  %v555 = vpop.f32.mrb[0].mxu0
  %v556 = vadd.f32 %v513, %v555
  %v557 = vpop.f32.mrb[0].mxu0
  %v558 = vadd.f32 %v515, %v557
  %v559 = vpop.f32.mrb[0].mxu0
  %v560 = vadd.f32 %v517, %v559
  %561 = vdwg.mxu0
  %v562 = vmul.f32 %v554, 0.26601171
  %v563 = vmul.f32 %v556, 0.26601171
  %v564 = vmul.f32 %v558, 0.26601171
  %v565 = vmul.f32 %v560, 0.26601171
  %566 = vrot.lane.b32.xlu0 %v554, 1
  %v567 = vpop.permute.xlu0 %566
  %568 = vrot.lane.b32.xlu0 %v558, 1
  %v569 = vpop.permute.xlu0 %568
  %570 = vrot.lane.b32.xlu0 %v556, 1
  %v571 = vpop.permute.xlu0 %570
  %572 = vrot.lane.b32.xlu0 %v560, 1
  %v573 = vpop.permute.xlu0 %572
  %v574 = vsel %vm290, %v567, %v571
  %v575 = vsel %vm290, %v569, %v573
  %v576 = vsel %vm290, %v571, %v567
  %v577 = vsel %vm290, %v573, %v569
  %578 = vrot.lane.b32.xlu0 %v554, 127
  %v579 = vpop.permute.xlu0 %578
  %580 = vrot.lane.b32.xlu0 %v558, 127
  %v581 = vpop.permute.xlu0 %580
  %582 = vrot.lane.b32.xlu0 %v556, 127
  %v583 = vpop.permute.xlu0 %582
  %584 = vrot.lane.b32.xlu0 %v560, 127
  %v585 = vpop.permute.xlu0 %584
  %v586 = vsel %vm303, %v579, %v583
  %v587 = vsel %vm303, %v581, %v585
  %v588 = vsel %vm303, %v583, %v579
  %v589 = vsel %vm303, %v585, %v581
  %v590 = vadd.f32 %v576, %v586
  %v591 = vadd.f32 %v574, %v588
  %v592 = vadd.f32 %v577, %v587
  %v593 = vadd.f32 %v575, %v589
  %v594 = vmul.f32 %v590, 0.21300554
  %v595 = vmul.f32 %v591, 0.21300554
  %v596 = vmul.f32 %v592, 0.21300554
  %v597 = vmul.f32 %v593, 0.21300554
  %v598 = vadd.f32 %v562, %v594
  %v599 = vadd.f32 %v563, %v595
  %v600 = vadd.f32 %v564, %v596
  %v601 = vadd.f32 %v565, %v597
  %602 = vrot.lane.b32.xlu0 %v554, 2
  %v603 = vpop.permute.xlu0 %602
  %604 = vrot.lane.b32.xlu0 %v558, 2
  %v605 = vpop.permute.xlu0 %604
  %606 = vrot.lane.b32.xlu0 %v556, 2
  %v607 = vpop.permute.xlu0 %606
  %608 = vrot.lane.b32.xlu0 %v560, 2
  %v609 = vpop.permute.xlu0 %608
  %v610 = vsel %vm328, %v603, %v607
  %v611 = vsel %vm328, %v605, %v609
  %v612 = vsel %vm328, %v607, %v603
  %v613 = vsel %vm328, %v609, %v605
  %614 = vrot.lane.b32.xlu0 %v554, 126
  %v615 = vpop.permute.xlu0 %614
  %616 = vrot.lane.b32.xlu0 %v558, 126
  %v617 = vpop.permute.xlu0 %616
  %618 = vrot.lane.b32.xlu0 %v556, 126
  %v619 = vpop.permute.xlu0 %618
  %620 = vrot.lane.b32.xlu0 %v560, 126
  %v621 = vpop.permute.xlu0 %620
  %v622 = vsel %vm341, %v615, %v619
  %v623 = vsel %vm341, %v617, %v621
  %v624 = vsel %vm341, %v619, %v615
  %v625 = vsel %vm341, %v621, %v617
  %v626 = vadd.f32 %v612, %v622
  %v627 = vadd.f32 %v610, %v624
  %v628 = vadd.f32 %v613, %v623
  %v629 = vadd.f32 %v611, %v625
  %v630 = vmul.f32 %v626, 0.10936069
  %v631 = vmul.f32 %v627, 0.10936069
  %v632 = vmul.f32 %v628, 0.10936069
  %v633 = vmul.f32 %v629, 0.10936069
  %v634 = vadd.f32 %v598, %v630
  %v635 = vadd.f32 %v599, %v631
  %v636 = vadd.f32 %v600, %v632
  %v637 = vadd.f32 %v601, %v633
  %638 = vrot.lane.b32.xlu0 %v554, 3
  %v639 = vpop.permute.xlu0 %638
  %640 = vrot.lane.b32.xlu0 %v558, 3
  %v641 = vpop.permute.xlu0 %640
  %642 = vrot.lane.b32.xlu0 %v556, 3
  %v643 = vpop.permute.xlu0 %642
  %644 = vrot.lane.b32.xlu0 %v560, 3
  %v645 = vpop.permute.xlu0 %644
  %v646 = vsel %vm366, %v639, %v643
  %v647 = vsel %vm366, %v641, %v645
  %v648 = vsel %vm366, %v643, %v639
  %v649 = vsel %vm366, %v645, %v641
  %650 = vrot.lane.b32.xlu0 %v554, 125
  %v651 = vpop.permute.xlu0 %650
  %652 = vrot.lane.b32.xlu0 %v558, 125
  %v653 = vpop.permute.xlu0 %652
  %654 = vrot.lane.b32.xlu0 %v556, 125
  %v655 = vpop.permute.xlu0 %654
  %656 = vrot.lane.b32.xlu0 %v560, 125
  %v657 = vpop.permute.xlu0 %656
  %v658 = vsel %vm379, %v651, %v655
  %v659 = vsel %vm379, %v653, %v657
  %v660 = vsel %vm379, %v655, %v651
  %v661 = vsel %vm379, %v657, %v653
  %v662 = vadd.f32 %v648, %v658
  %v663 = vadd.f32 %v646, %v660
  %v664 = vadd.f32 %v649, %v659
  %v665 = vadd.f32 %v647, %v661
  %v666 = vmul.f32 %v662, 0.036000773
  %v667 = vmul.f32 %v663, 0.036000773
  %v668 = vmul.f32 %v664, 0.036000773
  %v669 = vmul.f32 %v665, 0.036000773
  %v670 = vadd.f32 %v634, %v666
  %v671 = vadd.f32 %v635, %v667
  %v672 = vadd.f32 %v636, %v668
  %v673 = vadd.f32 %v637, %v669
  %674 = vrot.lane.b32.xlu0 %v554, 4
  %v675 = vpop.permute.xlu0 %674
  %676 = vrot.lane.b32.xlu0 %v558, 4
  %v677 = vpop.permute.xlu0 %676
  %678 = vrot.lane.b32.xlu0 %v556, 4
  %v679 = vpop.permute.xlu0 %678
  %680 = vrot.lane.b32.xlu0 %v560, 4
  %v681 = vpop.permute.xlu0 %680
  %v682 = vsel %vm404, %v675, %v679
  %v683 = vsel %vm404, %v677, %v681
  %v684 = vsel %vm404, %v679, %v675
  %v685 = vsel %vm404, %v681, %v677
  %686 = vrot.lane.b32.xlu0 %v554, 124
  %v687 = vpop.permute.xlu0 %686
  %688 = vrot.lane.b32.xlu0 %v558, 124
  %v689 = vpop.permute.xlu0 %688
  %690 = vrot.lane.b32.xlu0 %v556, 124
  %v691 = vpop.permute.xlu0 %690
  %692 = vrot.lane.b32.xlu0 %v560, 124
  %v693 = vpop.permute.xlu0 %692
  %v694 = vsel %vm417, %v687, %v691
  %v695 = vsel %vm417, %v689, %v693
  %v696 = vsel %vm417, %v691, %v687
  %v697 = vsel %vm417, %v693, %v689
  %v698 = vadd.f32 %v684, %v694
  %v699 = vadd.f32 %v682, %v696
  %v700 = vadd.f32 %v685, %v695
  %v701 = vadd.f32 %v683, %v697
  %v702 = vmul.f32 %v698, 0.007598758
  %v703 = vmul.f32 %v699, 0.007598758
  %v704 = vmul.f32 %v700, 0.007598758
  %v705 = vmul.f32 %v701, 0.007598758
  %v706 = vadd.f32 %v670, %v702
  %v707 = vadd.f32 %v671, %v703
  %v708 = vadd.f32 %v672, %v704
  %v709 = vadd.f32 %v673, %v705
  %710 = vrot.lane.b32.xlu0 %v554, 5
  %v711 = vpop.permute.xlu0 %710
  %712 = vrot.lane.b32.xlu0 %v558, 5
  %v713 = vpop.permute.xlu0 %712
  %714 = vrot.lane.b32.xlu0 %v556, 5
  %v715 = vpop.permute.xlu0 %714
  %716 = vrot.lane.b32.xlu0 %v560, 5
  %v717 = vpop.permute.xlu0 %716
  %v718 = vsel %vm442, %v711, %v715
  %v719 = vsel %vm442, %v713, %v717
  %v720 = vsel %vm442, %v715, %v711
  %v721 = vsel %vm442, %v717, %v713
  %722 = vrot.lane.b32.xlu0 %v554, 123
  %v723 = vpop.permute.xlu0 %722
  %724 = vrot.lane.b32.xlu0 %v558, 123
  %v725 = vpop.permute.xlu0 %724
  %726 = vrot.lane.b32.xlu0 %v556, 123
  %v727 = vpop.permute.xlu0 %726
  %728 = vrot.lane.b32.xlu0 %v560, 123
  %v729 = vpop.permute.xlu0 %728
  %v730 = vsel %vm455, %v723, %v727
  %v731 = vsel %vm455, %v725, %v729
  %v732 = vsel %vm455, %v727, %v723
  %v733 = vsel %vm455, %v729, %v725
  %v734 = vadd.f32 %v720, %v730
  %v735 = vadd.f32 %v718, %v732
  %v736 = vadd.f32 %v721, %v731
  %v737 = vadd.f32 %v719, %v733
  %v738 = vmul.f32 %v734, 0.0010283801
  %v739 = vmul.f32 %v735, 0.0010283801
  %v740 = vmul.f32 %v736, 0.0010283801
  %v741 = vmul.f32 %v737, 0.0010283801
  %v742 = vadd.f32 %v706, %v738
  %v743 = vadd.f32 %v707, %v739
  %v744 = vadd.f32 %v708, %v740
  %v745 = vadd.f32 %v709, %v741
  %v746 = vpack.c.bf16 %v147, %v145
  %v747 = vpack.c.bf16 %v148, %v146
  %v748 = vpack.c.bf16 %v151, %v149
  %v749 = vpack.c.bf16 %v152, %v150
  %750 = vmatprep.subr.bf16.mxu0 %v749
  %751 = vmatpush1.bf16.msra.mxu0 %v748
  %752 = vmatprep.subr.bf16.mxu0 0
  %753 = vmatpush1.bf16.msra.mxu0 0
  %754 = vmatprep.subr.bf16.mxu0 0
  %755 = vmatpush1.bf16.msra.mxu0 0
  %756 = vmatprep.subr.bf16.mxu0 0
  %757 = vmatpush1.bf16.msra.mxu0 0
  %758 = vmatprep.subr.bf16.mxu0 0
  %759 = vmatpush1.bf16.msra.mxu0 0
  %760 = vmatprep.subr.bf16.mxu0 0
  %761 = vmatpush1.bf16.msra.mxu0 0
  %762 = vmatprep.subr.bf16.mxu0 0
  %763 = vmatpush1.bf16.msra.mxu0 0
  %764 = vmatprep.subr.bf16.mxu0 0
  %765 = vmatpush1.bf16.msra.mxu0 0
  %766 = vmatprep.subr.bf16.mxu0 0
  %767 = vmatpush1.bf16.msra.mxu0 0
  %768 = vmatprep.subr.bf16.mxu0 0
  %769 = vmatpush1.bf16.msra.mxu0 0
  %770 = vmatprep.subr.bf16.mxu0 0
  %771 = vmatpush1.bf16.msra.mxu0 0
  %772 = vmatprep.subr.bf16.mxu0 0
  %773 = vmatpush1.bf16.msra.mxu0 0
  %774 = vmatprep.subr.bf16.mxu0 0
  %775 = vmatpush1.bf16.msra.mxu0 0
  %776 = vmatprep.subr.bf16.mxu0 0
  %777 = vmatpush1.bf16.msra.mxu0 0
  %778 = vmatprep.subr.bf16.mxu0 0
  %779 = vmatpush1.bf16.msra.mxu0 0
  %780 = vmatprep.subr.bf16.mxu0 0
  %781 = vmatpush1.bf16.msra.mxu0 0
  %782 = vmatprep.mubr.bf16.mxu0 0
  %783 = vmatmul.mubr.bf16.gmra.mrb[0].mxu0 %v180
  %v784 = vpop.f32.mrb[0].mxu0
  %v785 = vadd.f32 0.0, %v784
  %v786 = vpop.f32.mrb[0].mxu0
  %v787 = vadd.f32 0.0, %v786
  %v788 = vpop.f32.mrb[0].mxu0
  %v789 = vadd.f32 0.0, %v788
  %v790 = vpop.f32.mrb[0].mxu0
  %v791 = vadd.f32 0.0, %v790
  %792 = vdwg.mxu0
  %793 = vmatprep.subr.bf16.mxu0 %v747
  %794 = vmatpush1.bf16.msra.mxu0 %v746
  %795 = vmatprep.subr.bf16.mxu0 0
  %796 = vmatpush1.bf16.msra.mxu0 0
  %797 = vmatprep.subr.bf16.mxu0 0
  %798 = vmatpush1.bf16.msra.mxu0 0
  %799 = vmatprep.subr.bf16.mxu0 0
  %800 = vmatpush1.bf16.msra.mxu0 0
  %801 = vmatprep.subr.bf16.mxu0 0
  %802 = vmatpush1.bf16.msra.mxu0 0
  %803 = vmatprep.subr.bf16.mxu0 0
  %804 = vmatpush1.bf16.msra.mxu0 0
  %805 = vmatprep.subr.bf16.mxu0 0
  %806 = vmatpush1.bf16.msra.mxu0 0
  %807 = vmatprep.subr.bf16.mxu0 0
  %808 = vmatpush1.bf16.msra.mxu0 0
  %809 = vmatprep.subr.bf16.mxu0 0
  %810 = vmatpush1.bf16.msra.mxu0 0
  %811 = vmatprep.subr.bf16.mxu0 0
  %812 = vmatpush1.bf16.msra.mxu0 0
  %813 = vmatprep.subr.bf16.mxu0 0
  %814 = vmatpush1.bf16.msra.mxu0 0
  %815 = vmatprep.subr.bf16.mxu0 0
  %816 = vmatpush1.bf16.msra.mxu0 0
  %817 = vmatprep.subr.bf16.mxu0 0
  %818 = vmatpush1.bf16.msra.mxu0 0
  %819 = vmatprep.subr.bf16.mxu0 0
  %820 = vmatpush1.bf16.msra.mxu0 0
  %821 = vmatprep.subr.bf16.mxu0 0
  %822 = vmatpush1.bf16.msra.mxu0 0
  %823 = vmatprep.subr.bf16.mxu0 0
  %824 = vmatpush1.bf16.msra.mxu0 0
  %825 = vmatprep.mubr.bf16.mxu0 0
  %826 = vmatmul.mubr.bf16.gmra.mrb[0].mxu0 %v231
  %v827 = vpop.f32.mrb[0].mxu0
  %v828 = vadd.f32 %v785, %v827
  %v829 = vpop.f32.mrb[0].mxu0
  %v830 = vadd.f32 %v787, %v829
  %v831 = vpop.f32.mrb[0].mxu0
  %v832 = vadd.f32 %v789, %v831
  %v833 = vpop.f32.mrb[0].mxu0
  %v834 = vadd.f32 %v791, %v833
  %835 = vdwg.mxu0
  %v836 = vmul.f32 %v828, 0.26601171
  %v837 = vmul.f32 %v830, 0.26601171
  %v838 = vmul.f32 %v832, 0.26601171
  %v839 = vmul.f32 %v834, 0.26601171
  %840 = vrot.lane.b32.xlu0 %v828, 1
  %v841 = vpop.permute.xlu0 %840
  %842 = vrot.lane.b32.xlu0 %v832, 1
  %v843 = vpop.permute.xlu0 %842
  %844 = vrot.lane.b32.xlu0 %v830, 1
  %v845 = vpop.permute.xlu0 %844
  %846 = vrot.lane.b32.xlu0 %v834, 1
  %v847 = vpop.permute.xlu0 %846
  %v848 = vsel %vm290, %v841, %v845
  %v849 = vsel %vm290, %v843, %v847
  %v850 = vsel %vm290, %v845, %v841
  %v851 = vsel %vm290, %v847, %v843
  %852 = vrot.lane.b32.xlu0 %v828, 127
  %v853 = vpop.permute.xlu0 %852
  %854 = vrot.lane.b32.xlu0 %v832, 127
  %v855 = vpop.permute.xlu0 %854
  %856 = vrot.lane.b32.xlu0 %v830, 127
  %v857 = vpop.permute.xlu0 %856
  %858 = vrot.lane.b32.xlu0 %v834, 127
  %v859 = vpop.permute.xlu0 %858
  %v860 = vsel %vm303, %v853, %v857
  %v861 = vsel %vm303, %v855, %v859
  %v862 = vsel %vm303, %v857, %v853
  %v863 = vsel %vm303, %v859, %v855
  %v864 = vadd.f32 %v850, %v860
  %v865 = vadd.f32 %v848, %v862
  %v866 = vadd.f32 %v851, %v861
  %v867 = vadd.f32 %v849, %v863
  %v868 = vmul.f32 %v864, 0.21300554
  %v869 = vmul.f32 %v865, 0.21300554
  %v870 = vmul.f32 %v866, 0.21300554
  %v871 = vmul.f32 %v867, 0.21300554
  %v872 = vadd.f32 %v836, %v868
  %v873 = vadd.f32 %v837, %v869
  %v874 = vadd.f32 %v838, %v870
  %v875 = vadd.f32 %v839, %v871
  %876 = vrot.lane.b32.xlu0 %v828, 2
  %v877 = vpop.permute.xlu0 %876
  %878 = vrot.lane.b32.xlu0 %v832, 2
  %v879 = vpop.permute.xlu0 %878
  %880 = vrot.lane.b32.xlu0 %v830, 2
  %v881 = vpop.permute.xlu0 %880
  %882 = vrot.lane.b32.xlu0 %v834, 2
  %v883 = vpop.permute.xlu0 %882
  %v884 = vsel %vm328, %v877, %v881
  %v885 = vsel %vm328, %v879, %v883
  %v886 = vsel %vm328, %v881, %v877
  %v887 = vsel %vm328, %v883, %v879
  %888 = vrot.lane.b32.xlu0 %v828, 126
  %v889 = vpop.permute.xlu0 %888
  %890 = vrot.lane.b32.xlu0 %v832, 126
  %v891 = vpop.permute.xlu0 %890
  %892 = vrot.lane.b32.xlu0 %v830, 126
  %v893 = vpop.permute.xlu0 %892
  %894 = vrot.lane.b32.xlu0 %v834, 126
  %v895 = vpop.permute.xlu0 %894
  %v896 = vsel %vm341, %v889, %v893
  %v897 = vsel %vm341, %v891, %v895
  %v898 = vsel %vm341, %v893, %v889
  %v899 = vsel %vm341, %v895, %v891
  %v900 = vadd.f32 %v886, %v896
  %v901 = vadd.f32 %v884, %v898
  %v902 = vadd.f32 %v887, %v897
  %v903 = vadd.f32 %v885, %v899
  %v904 = vmul.f32 %v900, 0.10936069
  %v905 = vmul.f32 %v901, 0.10936069
  %v906 = vmul.f32 %v902, 0.10936069
  %v907 = vmul.f32 %v903, 0.10936069
  %v908 = vadd.f32 %v872, %v904
  %v909 = vadd.f32 %v873, %v905
  %v910 = vadd.f32 %v874, %v906
  %v911 = vadd.f32 %v875, %v907
  %912 = vrot.lane.b32.xlu0 %v828, 3
  %v913 = vpop.permute.xlu0 %912
  %914 = vrot.lane.b32.xlu0 %v832, 3
  %v915 = vpop.permute.xlu0 %914
  %916 = vrot.lane.b32.xlu0 %v830, 3
  %v917 = vpop.permute.xlu0 %916
  %918 = vrot.lane.b32.xlu0 %v834, 3
  %v919 = vpop.permute.xlu0 %918
  %v920 = vsel %vm366, %v913, %v917
  %v921 = vsel %vm366, %v915, %v919
  %v922 = vsel %vm366, %v917, %v913
  %v923 = vsel %vm366, %v919, %v915
  %924 = vrot.lane.b32.xlu0 %v828, 125
  %v925 = vpop.permute.xlu0 %924
  %926 = vrot.lane.b32.xlu0 %v832, 125
  %v927 = vpop.permute.xlu0 %926
  %928 = vrot.lane.b32.xlu0 %v830, 125
  %v929 = vpop.permute.xlu0 %928
  %930 = vrot.lane.b32.xlu0 %v834, 125
  %v931 = vpop.permute.xlu0 %930
  %v932 = vsel %vm379, %v925, %v929
  %v933 = vsel %vm379, %v927, %v931
  %v934 = vsel %vm379, %v929, %v925
  %v935 = vsel %vm379, %v931, %v927
  %v936 = vadd.f32 %v922, %v932
  %v937 = vadd.f32 %v920, %v934
  %v938 = vadd.f32 %v923, %v933
  %v939 = vadd.f32 %v921, %v935
  %v940 = vmul.f32 %v936, 0.036000773
  %v941 = vmul.f32 %v937, 0.036000773
  %v942 = vmul.f32 %v938, 0.036000773
  %v943 = vmul.f32 %v939, 0.036000773
  %v944 = vadd.f32 %v908, %v940
  %v945 = vadd.f32 %v909, %v941
  %v946 = vadd.f32 %v910, %v942
  %v947 = vadd.f32 %v911, %v943
  %948 = vrot.lane.b32.xlu0 %v828, 4
  %v949 = vpop.permute.xlu0 %948
  %950 = vrot.lane.b32.xlu0 %v832, 4
  %v951 = vpop.permute.xlu0 %950
  %952 = vrot.lane.b32.xlu0 %v830, 4
  %v953 = vpop.permute.xlu0 %952
  %954 = vrot.lane.b32.xlu0 %v834, 4
  %v955 = vpop.permute.xlu0 %954
  %v956 = vsel %vm404, %v949, %v953
  %v957 = vsel %vm404, %v951, %v955
  %v958 = vsel %vm404, %v953, %v949
  %v959 = vsel %vm404, %v955, %v951
  %960 = vrot.lane.b32.xlu0 %v828, 124
  %v961 = vpop.permute.xlu0 %960
  %962 = vrot.lane.b32.xlu0 %v832, 124
  %v963 = vpop.permute.xlu0 %962
  %964 = vrot.lane.b32.xlu0 %v830, 124
  %v965 = vpop.permute.xlu0 %964
  %966 = vrot.lane.b32.xlu0 %v834, 124
  %v967 = vpop.permute.xlu0 %966
  %v968 = vsel %vm417, %v961, %v965
  %v969 = vsel %vm417, %v963, %v967
  %v970 = vsel %vm417, %v965, %v961
  %v971 = vsel %vm417, %v967, %v963
  %v972 = vadd.f32 %v958, %v968
  %v973 = vadd.f32 %v956, %v970
  %v974 = vadd.f32 %v959, %v969
  %v975 = vadd.f32 %v957, %v971
  %v976 = vmul.f32 %v972, 0.007598758
  %v977 = vmul.f32 %v973, 0.007598758
  %v978 = vmul.f32 %v974, 0.007598758
  %v979 = vmul.f32 %v975, 0.007598758
  %v980 = vadd.f32 %v944, %v976
  %v981 = vadd.f32 %v945, %v977
  %v982 = vadd.f32 %v946, %v978
  %v983 = vadd.f32 %v947, %v979
  %984 = vrot.lane.b32.xlu0 %v828, 5
  %v985 = vpop.permute.xlu0 %984
  %986 = vrot.lane.b32.xlu0 %v832, 5
  %v987 = vpop.permute.xlu0 %986
  %988 = vrot.lane.b32.xlu0 %v830, 5
  %v989 = vpop.permute.xlu0 %988
  %990 = vrot.lane.b32.xlu0 %v834, 5
  %v991 = vpop.permute.xlu0 %990
  %v992 = vsel %vm442, %v985, %v989
  %v993 = vsel %vm442, %v987, %v991
  %v994 = vsel %vm442, %v989, %v985
  %v995 = vsel %vm442, %v991, %v987
  %996 = vrot.lane.b32.xlu0 %v828, 123
  %v997 = vpop.permute.xlu0 %996
  %998 = vrot.lane.b32.xlu0 %v832, 123
  %v999 = vpop.permute.xlu0 %998
  %1000 = vrot.lane.b32.xlu0 %v830, 123
  %v1001 = vpop.permute.xlu0 %1000
  %1002 = vrot.lane.b32.xlu0 %v834, 123
  %v1003 = vpop.permute.xlu0 %1002
  %v1004 = vsel %vm455, %v997, %v1001
  %v1005 = vsel %vm455, %v999, %v1003
  %v1006 = vsel %vm455, %v1001, %v997
  %v1007 = vsel %vm455, %v1003, %v999
  %v1008 = vadd.f32 %v994, %v1004
  %v1009 = vadd.f32 %v992, %v1006
  %v1010 = vadd.f32 %v995, %v1005
  %v1011 = vadd.f32 %v993, %v1007
  %v1012 = vmul.f32 %v1008, 0.0010283801
  %v1013 = vmul.f32 %v1009, 0.0010283801
  %v1014 = vmul.f32 %v1010, 0.0010283801
  %v1015 = vmul.f32 %v1011, 0.0010283801
  %v1016 = vadd.f32 %v980, %v1012
  %v1017 = vadd.f32 %v981, %v1013
  %v1018 = vadd.f32 %v982, %v1014
  %v1019 = vadd.f32 %v983, %v1015
  %v1020 = vpack.c.bf16 %v155, %v153
  %v1021 = vpack.c.bf16 %v156, %v154
  %v1022 = vpack.c.bf16 %v159, %v157
  %v1023 = vpack.c.bf16 %v160, %v158
  %1024 = vmatprep.subr.bf16.mxu0 %v1023
  %1025 = vmatpush1.bf16.msra.mxu0 %v1022
  %1026 = vmatprep.subr.bf16.mxu0 0
  %1027 = vmatpush1.bf16.msra.mxu0 0
  %1028 = vmatprep.subr.bf16.mxu0 0
  %1029 = vmatpush1.bf16.msra.mxu0 0
  %1030 = vmatprep.subr.bf16.mxu0 0
  %1031 = vmatpush1.bf16.msra.mxu0 0
  %1032 = vmatprep.subr.bf16.mxu0 0
  %1033 = vmatpush1.bf16.msra.mxu0 0
  %1034 = vmatprep.subr.bf16.mxu0 0
  %1035 = vmatpush1.bf16.msra.mxu0 0
  %1036 = vmatprep.subr.bf16.mxu0 0
  %1037 = vmatpush1.bf16.msra.mxu0 0
  %1038 = vmatprep.subr.bf16.mxu0 0
  %1039 = vmatpush1.bf16.msra.mxu0 0
  %1040 = vmatprep.subr.bf16.mxu0 0
  %1041 = vmatpush1.bf16.msra.mxu0 0
  %1042 = vmatprep.subr.bf16.mxu0 0
  %1043 = vmatpush1.bf16.msra.mxu0 0
  %1044 = vmatprep.subr.bf16.mxu0 0
  %1045 = vmatpush1.bf16.msra.mxu0 0
  %1046 = vmatprep.subr.bf16.mxu0 0
  %1047 = vmatpush1.bf16.msra.mxu0 0
  %1048 = vmatprep.subr.bf16.mxu0 0
  %1049 = vmatpush1.bf16.msra.mxu0 0
  %1050 = vmatprep.subr.bf16.mxu0 0
  %1051 = vmatpush1.bf16.msra.mxu0 0
  %1052 = vmatprep.subr.bf16.mxu0 0
  %1053 = vmatpush1.bf16.msra.mxu0 0
  %1054 = vmatprep.subr.bf16.mxu0 0
  %1055 = vmatpush1.bf16.msra.mxu0 0
  %1056 = vmatprep.mubr.bf16.mxu0 0
  %1057 = vmatmul.mubr.bf16.gmra.mrb[0].mxu0 %v180
  %v1058 = vpop.f32.mrb[0].mxu0
  %v1059 = vadd.f32 0.0, %v1058
  %v1060 = vpop.f32.mrb[0].mxu0
  %v1061 = vadd.f32 0.0, %v1060
  %v1062 = vpop.f32.mrb[0].mxu0
  %v1063 = vadd.f32 0.0, %v1062
  %v1064 = vpop.f32.mrb[0].mxu0
  %v1065 = vadd.f32 0.0, %v1064
  %1066 = vdwg.mxu0
  %1067 = vmatprep.subr.bf16.mxu0 %v1021
  %1068 = vmatpush1.bf16.msra.mxu0 %v1020
  %1069 = vmatprep.subr.bf16.mxu0 0
  %1070 = vmatpush1.bf16.msra.mxu0 0
  %1071 = vmatprep.subr.bf16.mxu0 0
  %1072 = vmatpush1.bf16.msra.mxu0 0
  %1073 = vmatprep.subr.bf16.mxu0 0
  %1074 = vmatpush1.bf16.msra.mxu0 0
  %1075 = vmatprep.subr.bf16.mxu0 0
  %1076 = vmatpush1.bf16.msra.mxu0 0
  %1077 = vmatprep.subr.bf16.mxu0 0
  %1078 = vmatpush1.bf16.msra.mxu0 0
  %1079 = vmatprep.subr.bf16.mxu0 0
  %1080 = vmatpush1.bf16.msra.mxu0 0
  %1081 = vmatprep.subr.bf16.mxu0 0
  %1082 = vmatpush1.bf16.msra.mxu0 0
  %1083 = vmatprep.subr.bf16.mxu0 0
  %1084 = vmatpush1.bf16.msra.mxu0 0
  %1085 = vmatprep.subr.bf16.mxu0 0
  %1086 = vmatpush1.bf16.msra.mxu0 0
  %1087 = vmatprep.subr.bf16.mxu0 0
  %1088 = vmatpush1.bf16.msra.mxu0 0
  %1089 = vmatprep.subr.bf16.mxu0 0
  %1090 = vmatpush1.bf16.msra.mxu0 0
  %1091 = vmatprep.subr.bf16.mxu0 0
  %1092 = vmatpush1.bf16.msra.mxu0 0
  %1093 = vmatprep.subr.bf16.mxu0 0
  %1094 = vmatpush1.bf16.msra.mxu0 0
  %1095 = vmatprep.subr.bf16.mxu0 0
  %1096 = vmatpush1.bf16.msra.mxu0 0
  %1097 = vmatprep.subr.bf16.mxu0 0
  %1098 = vmatpush1.bf16.msra.mxu0 0
  %1099 = vmatprep.mubr.bf16.mxu0 0
  %1100 = vmatmul.mubr.bf16.gmra.mrb[0].mxu0 %v231
  %v1101 = vpop.f32.mrb[0].mxu0
  %v1102 = vadd.f32 %v1059, %v1101
  %v1103 = vpop.f32.mrb[0].mxu0
  %v1104 = vadd.f32 %v1061, %v1103
  %v1105 = vpop.f32.mrb[0].mxu0
  %v1106 = vadd.f32 %v1063, %v1105
  %v1107 = vpop.f32.mrb[0].mxu0
  %v1108 = vadd.f32 %v1065, %v1107
  %1109 = vdwg.mxu0
  %v1110 = vmul.f32 %v1102, 0.26601171
  %v1111 = vmul.f32 %v1104, 0.26601171
  %v1112 = vmul.f32 %v1106, 0.26601171
  %v1113 = vmul.f32 %v1108, 0.26601171
  %1114 = vrot.lane.b32.xlu0 %v1102, 1
  %v1115 = vpop.permute.xlu0 %1114
  %1116 = vrot.lane.b32.xlu0 %v1106, 1
  %v1117 = vpop.permute.xlu0 %1116
  %1118 = vrot.lane.b32.xlu0 %v1104, 1
  %v1119 = vpop.permute.xlu0 %1118
  %1120 = vrot.lane.b32.xlu0 %v1108, 1
  %v1121 = vpop.permute.xlu0 %1120
  %v1122 = vsel %vm290, %v1115, %v1119
  %v1123 = vsel %vm290, %v1117, %v1121
  %v1124 = vsel %vm290, %v1119, %v1115
  %v1125 = vsel %vm290, %v1121, %v1117
  %1126 = vrot.lane.b32.xlu0 %v1102, 127
  %v1127 = vpop.permute.xlu0 %1126
  %1128 = vrot.lane.b32.xlu0 %v1106, 127
  %v1129 = vpop.permute.xlu0 %1128
  %1130 = vrot.lane.b32.xlu0 %v1104, 127
  %v1131 = vpop.permute.xlu0 %1130
  %1132 = vrot.lane.b32.xlu0 %v1108, 127
  %v1133 = vpop.permute.xlu0 %1132
  %v1134 = vsel %vm303, %v1127, %v1131
  %v1135 = vsel %vm303, %v1129, %v1133
  %v1136 = vsel %vm303, %v1131, %v1127
  %v1137 = vsel %vm303, %v1133, %v1129
  %v1138 = vadd.f32 %v1124, %v1134
  %v1139 = vadd.f32 %v1122, %v1136
  %v1140 = vadd.f32 %v1125, %v1135
  %v1141 = vadd.f32 %v1123, %v1137
  %v1142 = vmul.f32 %v1138, 0.21300554
  %v1143 = vmul.f32 %v1139, 0.21300554
  %v1144 = vmul.f32 %v1140, 0.21300554
  %v1145 = vmul.f32 %v1141, 0.21300554
  %v1146 = vadd.f32 %v1110, %v1142
  %v1147 = vadd.f32 %v1111, %v1143
  %v1148 = vadd.f32 %v1112, %v1144
  %v1149 = vadd.f32 %v1113, %v1145
  %1150 = vrot.lane.b32.xlu0 %v1102, 2
  %v1151 = vpop.permute.xlu0 %1150
  %1152 = vrot.lane.b32.xlu0 %v1106, 2
  %v1153 = vpop.permute.xlu0 %1152
  %1154 = vrot.lane.b32.xlu0 %v1104, 2
  %v1155 = vpop.permute.xlu0 %1154
  %1156 = vrot.lane.b32.xlu0 %v1108, 2
  %v1157 = vpop.permute.xlu0 %1156
  %v1158 = vsel %vm328, %v1151, %v1155
  %v1159 = vsel %vm328, %v1153, %v1157
  %v1160 = vsel %vm328, %v1155, %v1151
  %v1161 = vsel %vm328, %v1157, %v1153
  %1162 = vrot.lane.b32.xlu0 %v1102, 126
  %v1163 = vpop.permute.xlu0 %1162
  %1164 = vrot.lane.b32.xlu0 %v1106, 126
  %v1165 = vpop.permute.xlu0 %1164
  %1166 = vrot.lane.b32.xlu0 %v1104, 126
  %v1167 = vpop.permute.xlu0 %1166
  %1168 = vrot.lane.b32.xlu0 %v1108, 126
  %v1169 = vpop.permute.xlu0 %1168
  %v1170 = vsel %vm341, %v1163, %v1167
  %v1171 = vsel %vm341, %v1165, %v1169
  %v1172 = vsel %vm341, %v1167, %v1163
  %v1173 = vsel %vm341, %v1169, %v1165
  %v1174 = vadd.f32 %v1160, %v1170
  %v1175 = vadd.f32 %v1158, %v1172
  %v1176 = vadd.f32 %v1161, %v1171
  %v1177 = vadd.f32 %v1159, %v1173
  %v1178 = vmul.f32 %v1174, 0.10936069
  %v1179 = vmul.f32 %v1175, 0.10936069
  %v1180 = vmul.f32 %v1176, 0.10936069
  %v1181 = vmul.f32 %v1177, 0.10936069
  %v1182 = vadd.f32 %v1146, %v1178
  %v1183 = vadd.f32 %v1147, %v1179
  %v1184 = vadd.f32 %v1148, %v1180
  %v1185 = vadd.f32 %v1149, %v1181
  %1186 = vrot.lane.b32.xlu0 %v1102, 3
  %v1187 = vpop.permute.xlu0 %1186
  %1188 = vrot.lane.b32.xlu0 %v1106, 3
  %v1189 = vpop.permute.xlu0 %1188
  %1190 = vrot.lane.b32.xlu0 %v1104, 3
  %v1191 = vpop.permute.xlu0 %1190
  %1192 = vrot.lane.b32.xlu0 %v1108, 3
  %v1193 = vpop.permute.xlu0 %1192
  %v1194 = vsel %vm366, %v1187, %v1191
  %v1195 = vsel %vm366, %v1189, %v1193
  %v1196 = vsel %vm366, %v1191, %v1187
  %v1197 = vsel %vm366, %v1193, %v1189
  %1198 = vrot.lane.b32.xlu0 %v1102, 125
  %v1199 = vpop.permute.xlu0 %1198
  %1200 = vrot.lane.b32.xlu0 %v1106, 125
  %v1201 = vpop.permute.xlu0 %1200
  %1202 = vrot.lane.b32.xlu0 %v1104, 125
  %v1203 = vpop.permute.xlu0 %1202
  %1204 = vrot.lane.b32.xlu0 %v1108, 125
  %v1205 = vpop.permute.xlu0 %1204
  %v1206 = vsel %vm379, %v1199, %v1203
  %v1207 = vsel %vm379, %v1201, %v1205
  %v1208 = vsel %vm379, %v1203, %v1199
  %v1209 = vsel %vm379, %v1205, %v1201
  %v1210 = vadd.f32 %v1196, %v1206
  %v1211 = vadd.f32 %v1194, %v1208
  %v1212 = vadd.f32 %v1197, %v1207
  %v1213 = vadd.f32 %v1195, %v1209
  %v1214 = vmul.f32 %v1210, 0.036000773
  %v1215 = vmul.f32 %v1211, 0.036000773
  %v1216 = vmul.f32 %v1212, 0.036000773
  %v1217 = vmul.f32 %v1213, 0.036000773
  %v1218 = vadd.f32 %v1182, %v1214
  %v1219 = vadd.f32 %v1183, %v1215
  %v1220 = vadd.f32 %v1184, %v1216
  %v1221 = vadd.f32 %v1185, %v1217
  %1222 = vrot.lane.b32.xlu0 %v1102, 4
  %v1223 = vpop.permute.xlu0 %1222
  %1224 = vrot.lane.b32.xlu0 %v1106, 4
  %v1225 = vpop.permute.xlu0 %1224
  %1226 = vrot.lane.b32.xlu0 %v1104, 4
  %v1227 = vpop.permute.xlu0 %1226
  %1228 = vrot.lane.b32.xlu0 %v1108, 4
  %v1229 = vpop.permute.xlu0 %1228
  %v1230 = vsel %vm404, %v1223, %v1227
  %v1231 = vsel %vm404, %v1225, %v1229
  %v1232 = vsel %vm404, %v1227, %v1223
  %v1233 = vsel %vm404, %v1229, %v1225
  %1234 = vrot.lane.b32.xlu0 %v1102, 124
  %v1235 = vpop.permute.xlu0 %1234
  %1236 = vrot.lane.b32.xlu0 %v1106, 124
  %v1237 = vpop.permute.xlu0 %1236
  %1238 = vrot.lane.b32.xlu0 %v1104, 124
  %v1239 = vpop.permute.xlu0 %1238
  %1240 = vrot.lane.b32.xlu0 %v1108, 124
  %v1241 = vpop.permute.xlu0 %1240
  %v1242 = vsel %vm417, %v1235, %v1239
  %v1243 = vsel %vm417, %v1237, %v1241
  %v1244 = vsel %vm417, %v1239, %v1235
  %v1245 = vsel %vm417, %v1241, %v1237
  %v1246 = vadd.f32 %v1232, %v1242
  %v1247 = vadd.f32 %v1230, %v1244
  %v1248 = vadd.f32 %v1233, %v1243
  %v1249 = vadd.f32 %v1231, %v1245
  %v1250 = vmul.f32 %v1246, 0.007598758
  %v1251 = vmul.f32 %v1247, 0.007598758
  %v1252 = vmul.f32 %v1248, 0.007598758
  %v1253 = vmul.f32 %v1249, 0.007598758
  %v1254 = vadd.f32 %v1218, %v1250
  %v1255 = vadd.f32 %v1219, %v1251
  %v1256 = vadd.f32 %v1220, %v1252
  %v1257 = vadd.f32 %v1221, %v1253
  %1258 = vrot.lane.b32.xlu0 %v1102, 5
  %v1259 = vpop.permute.xlu0 %1258
  %1260 = vrot.lane.b32.xlu0 %v1106, 5
  %v1261 = vpop.permute.xlu0 %1260
  %1262 = vrot.lane.b32.xlu0 %v1104, 5
  %v1263 = vpop.permute.xlu0 %1262
  %1264 = vrot.lane.b32.xlu0 %v1108, 5
  %v1265 = vpop.permute.xlu0 %1264
  %v1266 = vsel %vm442, %v1259, %v1263
  %v1267 = vsel %vm442, %v1261, %v1265
  %v1268 = vsel %vm442, %v1263, %v1259
  %v1269 = vsel %vm442, %v1265, %v1261
  %1270 = vrot.lane.b32.xlu0 %v1102, 123
  %v1271 = vpop.permute.xlu0 %1270
  %1272 = vrot.lane.b32.xlu0 %v1106, 123
  %v1273 = vpop.permute.xlu0 %1272
  %1274 = vrot.lane.b32.xlu0 %v1104, 123
  %v1275 = vpop.permute.xlu0 %1274
  %1276 = vrot.lane.b32.xlu0 %v1108, 123
  %v1277 = vpop.permute.xlu0 %1276
  %v1278 = vsel %vm455, %v1271, %v1275
  %v1279 = vsel %vm455, %v1273, %v1277
  %v1280 = vsel %vm455, %v1275, %v1271
  %v1281 = vsel %vm455, %v1277, %v1273
  %v1282 = vadd.f32 %v1268, %v1278
  %v1283 = vadd.f32 %v1266, %v1280
  %v1284 = vadd.f32 %v1269, %v1279
  %v1285 = vadd.f32 %v1267, %v1281
  %v1286 = vmul.f32 %v1282, 0.0010283801
  %v1287 = vmul.f32 %v1283, 0.0010283801
  %v1288 = vmul.f32 %v1284, 0.0010283801
  %v1289 = vmul.f32 %v1285, 0.0010283801
  %v1290 = vadd.f32 %v1254, %v1286
  %v1291 = vadd.f32 %v1255, %v1287
  %v1292 = vadd.f32 %v1256, %v1288
  %v1293 = vadd.f32 %v1257, %v1289
  %v1294 = vpack.c.bf16 %v163, %v161
  %v1295 = vpack.c.bf16 %v164, %v162
  %v1296 = vpack.c.bf16 %v167, %v165
  %v1297 = vpack.c.bf16 %v168, %v166
  %1298 = vmatprep.subr.bf16.mxu0 %v1297
  %1299 = vmatpush1.bf16.msra.mxu0 %v1296
  %1300 = vmatprep.subr.bf16.mxu0 0
  %1301 = vmatpush1.bf16.msra.mxu0 0
  %1302 = vmatprep.subr.bf16.mxu0 0
  %1303 = vmatpush1.bf16.msra.mxu0 0
  %1304 = vmatprep.subr.bf16.mxu0 0
  %1305 = vmatpush1.bf16.msra.mxu0 0
  %1306 = vmatprep.subr.bf16.mxu0 0
  %1307 = vmatpush1.bf16.msra.mxu0 0
  %1308 = vmatprep.subr.bf16.mxu0 0
  %1309 = vmatpush1.bf16.msra.mxu0 0
  %1310 = vmatprep.subr.bf16.mxu0 0
  %1311 = vmatpush1.bf16.msra.mxu0 0
  %1312 = vmatprep.subr.bf16.mxu0 0
  %1313 = vmatpush1.bf16.msra.mxu0 0
  %1314 = vmatprep.subr.bf16.mxu0 0
  %1315 = vmatpush1.bf16.msra.mxu0 0
  %1316 = vmatprep.subr.bf16.mxu0 0
  %1317 = vmatpush1.bf16.msra.mxu0 0
  %1318 = vmatprep.subr.bf16.mxu0 0
  %1319 = vmatpush1.bf16.msra.mxu0 0
  %1320 = vmatprep.subr.bf16.mxu0 0
  %1321 = vmatpush1.bf16.msra.mxu0 0
  %1322 = vmatprep.subr.bf16.mxu0 0
  %1323 = vmatpush1.bf16.msra.mxu0 0
  %1324 = vmatprep.subr.bf16.mxu0 0
  %1325 = vmatpush1.bf16.msra.mxu0 0
  %1326 = vmatprep.subr.bf16.mxu0 0
  %1327 = vmatpush1.bf16.msra.mxu0 0
  %1328 = vmatprep.subr.bf16.mxu0 0
  %1329 = vmatpush1.bf16.msra.mxu0 0
  %1330 = vmatprep.mubr.bf16.mxu0 0
  %1331 = vmatmul.mubr.bf16.gmra.mrb[0].mxu0 %v180
  %v1332 = vpop.f32.mrb[0].mxu0
  %v1333 = vadd.f32 0.0, %v1332
  %v1334 = vpop.f32.mrb[0].mxu0
  %v1335 = vadd.f32 0.0, %v1334
  %v1336 = vpop.f32.mrb[0].mxu0
  %v1337 = vadd.f32 0.0, %v1336
  %v1338 = vpop.f32.mrb[0].mxu0
  %v1339 = vadd.f32 0.0, %v1338
  %1340 = vdwg.mxu0
  %1341 = vmatprep.subr.bf16.mxu0 %v1295
  %1342 = vmatpush1.bf16.msra.mxu0 %v1294
  %1343 = vmatprep.subr.bf16.mxu0 0
  %1344 = vmatpush1.bf16.msra.mxu0 0
  %1345 = vmatprep.subr.bf16.mxu0 0
  %1346 = vmatpush1.bf16.msra.mxu0 0
  %1347 = vmatprep.subr.bf16.mxu0 0
  %1348 = vmatpush1.bf16.msra.mxu0 0
  %1349 = vmatprep.subr.bf16.mxu0 0
  %1350 = vmatpush1.bf16.msra.mxu0 0
  %1351 = vmatprep.subr.bf16.mxu0 0
  %1352 = vmatpush1.bf16.msra.mxu0 0
  %1353 = vmatprep.subr.bf16.mxu0 0
  %1354 = vmatpush1.bf16.msra.mxu0 0
  %1355 = vmatprep.subr.bf16.mxu0 0
  %1356 = vmatpush1.bf16.msra.mxu0 0
  %1357 = vmatprep.subr.bf16.mxu0 0
  %1358 = vmatpush1.bf16.msra.mxu0 0
  %1359 = vmatprep.subr.bf16.mxu0 0
  %1360 = vmatpush1.bf16.msra.mxu0 0
  %1361 = vmatprep.subr.bf16.mxu0 0
  %1362 = vmatpush1.bf16.msra.mxu0 0
  %1363 = vmatprep.subr.bf16.mxu0 0
  %1364 = vmatpush1.bf16.msra.mxu0 0
  %1365 = vmatprep.subr.bf16.mxu0 0
  %1366 = vmatpush1.bf16.msra.mxu0 0
  %1367 = vmatprep.subr.bf16.mxu0 0
  %1368 = vmatpush1.bf16.msra.mxu0 0
  %1369 = vmatprep.subr.bf16.mxu0 0
  %1370 = vmatpush1.bf16.msra.mxu0 0
  %1371 = vmatprep.subr.bf16.mxu0 0
  %1372 = vmatpush1.bf16.msra.mxu0 0
  %1373 = vmatprep.mubr.bf16.mxu0 0
  %1374 = vmatmul.mubr.bf16.gmra.mrb[0].mxu0 %v231
  %v1375 = vpop.f32.mrb[0].mxu0
  %v1376 = vadd.f32 %v1333, %v1375
  %v1377 = vpop.f32.mrb[0].mxu0
  %v1378 = vadd.f32 %v1335, %v1377
  %v1379 = vpop.f32.mrb[0].mxu0
  %v1380 = vadd.f32 %v1337, %v1379
  %v1381 = vpop.f32.mrb[0].mxu0
  %v1382 = vadd.f32 %v1339, %v1381
  %1383 = vdwg.mxu0
  %v1384 = vmul.f32 %v1376, 0.26601171
  %v1385 = vmul.f32 %v1378, 0.26601171
  %v1386 = vmul.f32 %v1380, 0.26601171
  %v1387 = vmul.f32 %v1382, 0.26601171
  %1388 = vrot.lane.b32.xlu0 %v1376, 1
  %v1389 = vpop.permute.xlu0 %1388
  %1390 = vrot.lane.b32.xlu0 %v1380, 1
  %v1391 = vpop.permute.xlu0 %1390
  %1392 = vrot.lane.b32.xlu0 %v1378, 1
  %v1393 = vpop.permute.xlu0 %1392
  %1394 = vrot.lane.b32.xlu0 %v1382, 1
  %v1395 = vpop.permute.xlu0 %1394
  %v1396 = vsel %vm290, %v1389, %v1393
  %v1397 = vsel %vm290, %v1391, %v1395
  %v1398 = vsel %vm290, %v1393, %v1389
  %v1399 = vsel %vm290, %v1395, %v1391
  %1400 = vrot.lane.b32.xlu0 %v1376, 127
  %v1401 = vpop.permute.xlu0 %1400
  %1402 = vrot.lane.b32.xlu0 %v1380, 127
  %v1403 = vpop.permute.xlu0 %1402
  %1404 = vrot.lane.b32.xlu0 %v1378, 127
  %v1405 = vpop.permute.xlu0 %1404
  %1406 = vrot.lane.b32.xlu0 %v1382, 127
  %v1407 = vpop.permute.xlu0 %1406
  %v1408 = vsel %vm303, %v1401, %v1405
  %v1409 = vsel %vm303, %v1403, %v1407
  %v1410 = vsel %vm303, %v1405, %v1401
  %v1411 = vsel %vm303, %v1407, %v1403
  %v1412 = vadd.f32 %v1398, %v1408
  %v1413 = vadd.f32 %v1396, %v1410
  %v1414 = vadd.f32 %v1399, %v1409
  %v1415 = vadd.f32 %v1397, %v1411
  %v1416 = vmul.f32 %v1412, 0.21300554
  %v1417 = vmul.f32 %v1413, 0.21300554
  %v1418 = vmul.f32 %v1414, 0.21300554
  %v1419 = vmul.f32 %v1415, 0.21300554
  %v1420 = vadd.f32 %v1384, %v1416
  %v1421 = vadd.f32 %v1385, %v1417
  %v1422 = vadd.f32 %v1386, %v1418
  %v1423 = vadd.f32 %v1387, %v1419
  %1424 = vrot.lane.b32.xlu0 %v1376, 2
  %v1425 = vpop.permute.xlu0 %1424
  %1426 = vrot.lane.b32.xlu0 %v1380, 2
  %v1427 = vpop.permute.xlu0 %1426
  %1428 = vrot.lane.b32.xlu0 %v1378, 2
  %v1429 = vpop.permute.xlu0 %1428
  %1430 = vrot.lane.b32.xlu0 %v1382, 2
  %v1431 = vpop.permute.xlu0 %1430
  %v1432 = vsel %vm328, %v1425, %v1429
  %v1433 = vsel %vm328, %v1427, %v1431
  %v1434 = vsel %vm328, %v1429, %v1425
  %v1435 = vsel %vm328, %v1431, %v1427
  %1436 = vrot.lane.b32.xlu0 %v1376, 126
  %v1437 = vpop.permute.xlu0 %1436
  %1438 = vrot.lane.b32.xlu0 %v1380, 126
  %v1439 = vpop.permute.xlu0 %1438
  %1440 = vrot.lane.b32.xlu0 %v1378, 126
  %v1441 = vpop.permute.xlu0 %1440
  %1442 = vrot.lane.b32.xlu0 %v1382, 126
  %v1443 = vpop.permute.xlu0 %1442
  %v1444 = vsel %vm341, %v1437, %v1441
  %v1445 = vsel %vm341, %v1439, %v1443
  %v1446 = vsel %vm341, %v1441, %v1437
  %v1447 = vsel %vm341, %v1443, %v1439
  %v1448 = vadd.f32 %v1434, %v1444
  %v1449 = vadd.f32 %v1432, %v1446
  %v1450 = vadd.f32 %v1435, %v1445
  %v1451 = vadd.f32 %v1433, %v1447
  %v1452 = vmul.f32 %v1448, 0.10936069
  %v1453 = vmul.f32 %v1449, 0.10936069
  %v1454 = vmul.f32 %v1450, 0.10936069
  %v1455 = vmul.f32 %v1451, 0.10936069
  %v1456 = vadd.f32 %v1420, %v1452
  %v1457 = vadd.f32 %v1421, %v1453
  %v1458 = vadd.f32 %v1422, %v1454
  %v1459 = vadd.f32 %v1423, %v1455
  %1460 = vrot.lane.b32.xlu0 %v1376, 3
  %v1461 = vpop.permute.xlu0 %1460
  %1462 = vrot.lane.b32.xlu0 %v1380, 3
  %v1463 = vpop.permute.xlu0 %1462
  %1464 = vrot.lane.b32.xlu0 %v1378, 3
  %v1465 = vpop.permute.xlu0 %1464
  %1466 = vrot.lane.b32.xlu0 %v1382, 3
  %v1467 = vpop.permute.xlu0 %1466
  %v1468 = vsel %vm366, %v1461, %v1465
  %v1469 = vsel %vm366, %v1463, %v1467
  %v1470 = vsel %vm366, %v1465, %v1461
  %v1471 = vsel %vm366, %v1467, %v1463
  %1472 = vrot.lane.b32.xlu0 %v1376, 125
  %v1473 = vpop.permute.xlu0 %1472
  %1474 = vrot.lane.b32.xlu0 %v1380, 125
  %v1475 = vpop.permute.xlu0 %1474
  %1476 = vrot.lane.b32.xlu0 %v1378, 125
  %v1477 = vpop.permute.xlu0 %1476
  %1478 = vrot.lane.b32.xlu0 %v1382, 125
  %v1479 = vpop.permute.xlu0 %1478
  %v1480 = vsel %vm379, %v1473, %v1477
  %v1481 = vsel %vm379, %v1475, %v1479
  %v1482 = vsel %vm379, %v1477, %v1473
  %v1483 = vsel %vm379, %v1479, %v1475
  %v1484 = vadd.f32 %v1470, %v1480
  %v1485 = vadd.f32 %v1468, %v1482
  %v1486 = vadd.f32 %v1471, %v1481
  %v1487 = vadd.f32 %v1469, %v1483
  %v1488 = vmul.f32 %v1484, 0.036000773
  %v1489 = vmul.f32 %v1485, 0.036000773
  %v1490 = vmul.f32 %v1486, 0.036000773
  %v1491 = vmul.f32 %v1487, 0.036000773
  %v1492 = vadd.f32 %v1456, %v1488
  %v1493 = vadd.f32 %v1457, %v1489
  %v1494 = vadd.f32 %v1458, %v1490
  %v1495 = vadd.f32 %v1459, %v1491
  %1496 = vrot.lane.b32.xlu0 %v1376, 4
  %v1497 = vpop.permute.xlu0 %1496
  %1498 = vrot.lane.b32.xlu0 %v1380, 4
  %v1499 = vpop.permute.xlu0 %1498
  %1500 = vrot.lane.b32.xlu0 %v1378, 4
  %v1501 = vpop.permute.xlu0 %1500
  %1502 = vrot.lane.b32.xlu0 %v1382, 4
  %v1503 = vpop.permute.xlu0 %1502
  %v1504 = vsel %vm404, %v1497, %v1501
  %v1505 = vsel %vm404, %v1499, %v1503
  %v1506 = vsel %vm404, %v1501, %v1497
  %v1507 = vsel %vm404, %v1503, %v1499
  %1508 = vrot.lane.b32.xlu0 %v1376, 124
  %v1509 = vpop.permute.xlu0 %1508
  %1510 = vrot.lane.b32.xlu0 %v1380, 124
  %v1511 = vpop.permute.xlu0 %1510
  %1512 = vrot.lane.b32.xlu0 %v1378, 124
  %v1513 = vpop.permute.xlu0 %1512
  %1514 = vrot.lane.b32.xlu0 %v1382, 124
  %v1515 = vpop.permute.xlu0 %1514
  %v1516 = vsel %vm417, %v1509, %v1513
  %v1517 = vsel %vm417, %v1511, %v1515
  %v1518 = vsel %vm417, %v1513, %v1509
  %v1519 = vsel %vm417, %v1515, %v1511
  %v1520 = vadd.f32 %v1506, %v1516
  %v1521 = vadd.f32 %v1504, %v1518
  %v1522 = vadd.f32 %v1507, %v1517
  %v1523 = vadd.f32 %v1505, %v1519
  %v1524 = vmul.f32 %v1520, 0.007598758
  %v1525 = vmul.f32 %v1521, 0.007598758
  %v1526 = vmul.f32 %v1522, 0.007598758
  %v1527 = vmul.f32 %v1523, 0.007598758
  %v1528 = vadd.f32 %v1492, %v1524
  %v1529 = vadd.f32 %v1493, %v1525
  %v1530 = vadd.f32 %v1494, %v1526
  %v1531 = vadd.f32 %v1495, %v1527
  %1532 = vrot.lane.b32.xlu0 %v1376, 5
  %v1533 = vpop.permute.xlu0 %1532
  %1534 = vrot.lane.b32.xlu0 %v1380, 5
  %v1535 = vpop.permute.xlu0 %1534
  %1536 = vrot.lane.b32.xlu0 %v1378, 5
  %v1537 = vpop.permute.xlu0 %1536
  %1538 = vrot.lane.b32.xlu0 %v1382, 5
  %v1539 = vpop.permute.xlu0 %1538
  %v1540 = vsel %vm442, %v1533, %v1537
  %v1541 = vsel %vm442, %v1535, %v1539
  %v1542 = vsel %vm442, %v1537, %v1533
  %v1543 = vsel %vm442, %v1539, %v1535
  %1544 = vrot.lane.b32.xlu0 %v1376, 123
  %v1545 = vpop.permute.xlu0 %1544
  %1546 = vrot.lane.b32.xlu0 %v1380, 123
  %v1547 = vpop.permute.xlu0 %1546
  %1548 = vrot.lane.b32.xlu0 %v1378, 123
  %v1549 = vpop.permute.xlu0 %1548
  %1550 = vrot.lane.b32.xlu0 %v1382, 123
  %v1551 = vpop.permute.xlu0 %1550
  %v1552 = vsel %vm455, %v1545, %v1549
  %v1553 = vsel %vm455, %v1547, %v1551
  %v1554 = vsel %vm455, %v1549, %v1545
  %v1555 = vsel %vm455, %v1551, %v1547
  %v1556 = vadd.f32 %v1542, %v1552
  %v1557 = vadd.f32 %v1540, %v1554
  %v1558 = vadd.f32 %v1543, %v1553
  %v1559 = vadd.f32 %v1541, %v1555
  %v1560 = vmul.f32 %v1556, 0.0010283801
  %v1561 = vmul.f32 %v1557, 0.0010283801
  %v1562 = vmul.f32 %v1558, 0.0010283801
  %v1563 = vmul.f32 %v1559, 0.0010283801
  %v1564 = vadd.f32 %v1528, %v1560
  %v1565 = vadd.f32 %v1529, %v1561
  %v1566 = vadd.f32 %v1530, %v1562
  %v1567 = vadd.f32 %v1531, %v1563
  %v1568 = vadd.f32 %v468, 0.5
  %v1569 = vadd.f32 %v469, 0.5
  %v1570 = vadd.f32 %v470, 0.5
  %v1571 = vadd.f32 %v471, 0.5
  %v1572 = vadd.f32 %v742, 0.5
  %v1573 = vadd.f32 %v743, 0.5
  %v1574 = vadd.f32 %v744, 0.5
  %v1575 = vadd.f32 %v745, 0.5
  %v1576 = vmul.f32 %v468, %v468
  %v1577 = vmul.f32 %v469, %v469
  %v1578 = vmul.f32 %v470, %v470
  %v1579 = vmul.f32 %v471, %v471
  %v1580 = vsub.f32 %v1016, %v1576
  %v1581 = vsub.f32 %v1017, %v1577
  %v1582 = vsub.f32 %v1018, %v1578
  %v1583 = vsub.f32 %v1019, %v1579
  %v1584 = vmul.f32 %v742, %v742
  %v1585 = vmul.f32 %v743, %v743
  %v1586 = vmul.f32 %v744, %v744
  %v1587 = vmul.f32 %v745, %v745
  %v1588 = vsub.f32 %v1290, %v1584
  %v1589 = vsub.f32 %v1291, %v1585
  %v1590 = vsub.f32 %v1292, %v1586
  %v1591 = vsub.f32 %v1293, %v1587
  %v1592 = vmul.f32 %v468, %v742
  %v1593 = vmul.f32 %v469, %v743
  %v1594 = vmul.f32 %v470, %v744
  %v1595 = vmul.f32 %v471, %v745
  %v1596 = vsub.f32 %v1564, %v1592
  %v1597 = vsub.f32 %v1565, %v1593
  %v1598 = vsub.f32 %v1566, %v1594
  %v1599 = vsub.f32 %v1567, %v1595
  %v1600 = vmul.f32 %v1568, 2.0
  %v1601 = vmul.f32 %v1569, 2.0
  %v1602 = vmul.f32 %v1570, 2.0
  %v1603 = vmul.f32 %v1571, 2.0
  %v1604 = vmul.f32 %v1600, %v1572
  %v1605 = vmul.f32 %v1601, %v1573
  %v1606 = vmul.f32 %v1602, %v1574
  %v1607 = vmul.f32 %v1603, %v1575
  %v1608 = vadd.f32 %v1604, 0.0001
  %v1609 = vadd.f32 %v1605, 0.0001
  %v1610 = vadd.f32 %v1606, 0.0001
  %v1611 = vadd.f32 %v1607, 0.0001
  %v1612 = vmul.f32 %v1596, 2.0
  %v1613 = vmul.f32 %v1597, 2.0
  %v1614 = vmul.f32 %v1598, 2.0
  %v1615 = vmul.f32 %v1599, 2.0
  %v1616 = vadd.f32 %v1612, 0.0009
  %v1617 = vadd.f32 %v1613, 0.0009
  %v1618 = vadd.f32 %v1614, 0.0009
  %v1619 = vadd.f32 %v1615, 0.0009
  %v1620 = vmul.f32 %v1608, %v1616
  %v1621 = vmul.f32 %v1609, %v1617
  %v1622 = vmul.f32 %v1610, %v1618
  %v1623 = vmul.f32 %v1611, %v1619
  %v1624 = vmul.f32 %v1568, %v1568
  %v1625 = vmul.f32 %v1569, %v1569
  %v1626 = vmul.f32 %v1570, %v1570
  %v1627 = vmul.f32 %v1571, %v1571
  %v1628 = vmul.f32 %v1572, %v1572
  %v1629 = vmul.f32 %v1573, %v1573
  %v1630 = vmul.f32 %v1574, %v1574
  %v1631 = vmul.f32 %v1575, %v1575
  %v1632 = vadd.f32 %v1624, %v1628
  %v1633 = vadd.f32 %v1625, %v1629
  %v1634 = vadd.f32 %v1626, %v1630
  %v1635 = vadd.f32 %v1627, %v1631
  %v1636 = vadd.f32 %v1632, 0.0001
  %v1637 = vadd.f32 %v1633, 0.0001
  %v1638 = vadd.f32 %v1634, 0.0001
  %v1639 = vadd.f32 %v1635, 0.0001
  %v1640 = vadd.f32 %v1580, %v1588
  %v1641 = vadd.f32 %v1581, %v1589
  %v1642 = vadd.f32 %v1582, %v1590
  %v1643 = vadd.f32 %v1583, %v1591
  %v1644 = vadd.f32 %v1640, 0.0009
  %v1645 = vadd.f32 %v1641, 0.0009
  %v1646 = vadd.f32 %v1642, 0.0009
  %v1647 = vadd.f32 %v1643, 0.0009
  %v1648 = vmul.f32 %v1636, %v1644
  %v1649 = vmul.f32 %v1637, %v1645
  %v1650 = vmul.f32 %v1638, %v1646
  %v1651 = vmul.f32 %v1639, %v1647
  %v1652 = vrcp.pop %v1648
  %v1653 = vrcp.pop %v1649
  %v1654 = vrcp.pop %v1650
  %v1655 = vrcp.pop %v1651
  %v1656 = vmul.f32 %v1620, %v1652
  %v1657 = vmul.f32 %v1621, %v1653
  %v1658 = vmul.f32 %v1622, %v1654
  %v1659 = vmul.f32 %v1623, %v1655
  %v1660 = vld [vmem:[%s6] sm:$0x3]
  %v1662 = vlaneseq
  %v1663 = vshrl.u32 %v1662, 7
  %v1664 = vsub.s32 0, %v1663
  %v1665 = vrot.slane %v1660, %v1664
  %v1666 = vlaneseq
  %v1667 = vshrl.u32 %v1666, 7
  %v1668 = vsub.s32 1, %v1667
  %v1669 = vrot.slane %v1660, %v1668
  %v1672 = vmul.f32 %v1656, %v1665
  %v1673 = vmul.f32 %v1657, %v1669
  %v1674 = vmul.f32 %v1658, %v1665
  %v1675 = vmul.f32 %v1659, %v1669
  %v1676 = vadd.f32 %v1672, %v1673
  %v1677 = vadd.f32 %v1674, %v1675
  %s1678 = smul.u32 0, 16
  %v1679 = vlaneseq
  %v1680 = vshrl.u32 %v1679, 7
  %v1681 = vadd.s32 %v1680, 8
  %v1682 = vstv %s1678
  %v1683 = vadd.s32 %v1682, %v1680
  %v1684 = vadd.s32 %v1682, %v1681
  %vm1685 = vcmp.lt.s32.totalorder %v1683, 6
  %vm1686 = vcmp.lt.s32.totalorder %v1684, 6
  %v1687 = vsel %vm1685, %v1676, 0.0
  %v1688 = vsel %vm1686, %v1677, 0.0
  %v1689 = vadd.f32 %v1687, %v1688
  %1690 = vst [vmem:[%s7] sm:$0xff] %v1689
  // Predicated region
  $region30: #{ssim_loss.1} parent=0 // pred_check
    _
  $region31: #{ssim_loss.1} parent=0 // pred_check_branch
    %1692 = sbr.rel (0) target = $region33
  $region32: #{ssim_loss.1} parent=0 // pred_region
    _
  $region33: #{ssim_loss.1} parent=0 // pred_fallthru
    _
  // Predicated region
  $region34: #{ssim_loss.1} parent=0 // pred_check
    _
  $region35: #{ssim_loss.1} parent=0 // pred_check_branch
    %1694 = sbr.rel (0) target = $region37
  $region36: #{ssim_loss.1} parent=0 // pred_region
    _
  $region37: #{ssim_loss.1} parent=0 // pred_fallthru
    _

</llo_original>
